<compile_context>
chip_gen: v7x
topology: tpu7x:2x2x1
jax: 0.10.0
libtpu: 0.0.40
codegen_flags: <defaults>
</compile_context>

<pallas_src>
import functools

import jax
import jax.numpy as jnp
from jax.experimental import pallas as pl
from jax.experimental.pallas import tpu as pltpu


def _wbce_partial_kernel(scores_ref, labels_ref, partial_ref, *, inv_scale, pos_weight):
    # Numerically-stable BCEWithLogitsLoss with pos_weight (matches torch):
    #   l = (1-y)*x + (1 + (p-1)*y) * (max(-x, 0) + log1p(exp(-|x|)))
    x = scores_ref[...].astype(jnp.float32) * inv_scale          # (TB, N)
    y = labels_ref[...].astype(jnp.float32)
    log_weight = 1.0 + (pos_weight - 1.0) * y
    softplus_neg = jnp.maximum(-x, 0.0) + jnp.log1p(jnp.exp(-jnp.abs(x)))
    loss = (1.0 - y) * x + log_weight * softplus_neg             # (TB, N)

    tile_sum = jnp.sum(loss)  # mostly VPU adds + one cross-lane reduce per tile
    # Broadcast the scalar into a full (8,128) tile so the output block keeps an
    # (8,128)-aligned, unmasked store; the wrapper reads element [.., 0, 0].
    partial_ref[...] = jnp.full(partial_ref.shape, tile_sum, jnp.float32)


def _pick_tile_b(b, n, requested):
    # Biggest batch tile that divides B and keeps the double-buffered inputs
    # comfortably under the most restrictive scoped-VMEM default (v5e: 16 MiB).
    vmem_budget = 12 * 1024 * 1024  # bytes; 16*t*n = 2 inputs * 2 buffers * 4B
    for t in (requested, 8192, 4096, 2048, 1024, 512, 256, 128, 64, 32, 16, 8):
        if t <= b and b % t == 0 and 16 * t * n <= vmem_budget:
            return t
    return b


def weighted_bce_loss(scores, labels, *, reduction="mean", temperature=1.0,
                      scaling_factor=25.0, pos_weight=8.0, tile_b=2048):
    if temperature <= 0:
        raise ValueError(f"Temperature must be positive, got {temperature}")
    if scaling_factor <= 0:
        raise ValueError(f"Scaling factor must be positive, got {scaling_factor}")
    if scores.shape != labels.shape:
        raise ValueError(f"Shape mismatch: scores {scores.shape} != labels {labels.shape}")
    # TODO(synk): the torch module raises ValueError on non-finite inputs; a
    # data-dependent host-side error has no clean in-kernel equivalent, skipped.

    if scores.ndim == 1:
        scores2 = scores.reshape(1, -1)
        labels2 = labels.reshape(1, -1)
    else:
        scores2 = scores.reshape(-1, scores.shape[-1])
        labels2 = labels.reshape(-1, labels.shape[-1])
    B, N = scores2.shape

    tb = _pick_tile_b(B, N, int(tile_b))
    num_tiles = B // tb

    inv_scale = 1.0 / (float(scaling_factor) * float(temperature))
    kernel = functools.partial(_wbce_partial_kernel,
                               inv_scale=inv_scale,
                               pos_weight=float(pos_weight))

    partials = pl.pallas_call(
        kernel,
        out_shape=jax.ShapeDtypeStruct((num_tiles, 8, 128), jnp.float32),
        grid_spec=pltpu.PrefetchScalarGridSpec(
            num_scalar_prefetch=0,
            grid=(num_tiles,),
            in_specs=[
                pl.BlockSpec((tb, N), lambda i: (i, 0)),
                pl.BlockSpec((tb, N), lambda i: (i, 0)),
            ],
            out_specs=pl.BlockSpec((1, 8, 128), lambda i: (i, 0, 0)),
        ),
        compiler_params=pltpu.CompilerParams(
            dimension_semantics=("parallel",)),
    )(scores2, labels2)

    total = jnp.sum(partials[:, 0, 0])
    t2 = jnp.float32(temperature) ** 2
    if reduction == "mean":
        return total / jnp.float32(B * N) * t2
    if reduction == "sum":
        return total * t2
    # TODO(synk): reduction='none' (elementwise output) not implemented here.
    raise NotImplementedError(f"reduction={reduction!r} is not supported")


def _reference(scores, labels, *, reduction="mean", temperature=1.0,
               scaling_factor=25.0, pos_weight=8.0):
    """Pure-JAX reference mirroring torch BCEWithLogitsLoss(pos_weight) forward."""
    x = scores / scaling_factor / temperature
    log_weight = 1.0 + (pos_weight - 1.0) * labels
    loss = (1.0 - labels) * x + log_weight * (
        jnp.maximum(-x, 0.0) + jnp.log1p(jnp.exp(-jnp.abs(x))))
    if reduction == "mean":
        loss = jnp.mean(loss)
    elif reduction == "sum":
        loss = jnp.sum(loss)
    return loss * temperature ** 2


if __name__ == "__main__":
    key = jax.random.PRNGKey(0)
    k1, k2 = jax.random.split(key)

    B, N = 512, 128                       # lane-dense: last dim is a multiple of 128
    scores = jax.random.normal(k1, (B, N), jnp.float32) * 30.0   # raw logits (pre-scaling)
    labels = (jax.random.uniform(k2, (B, N)) < 0.25).astype(jnp.float32)

    # Default path: one large batch tile (grid folds to a single step here).
    loss = jax.block_until_ready(weighted_bce_loss(scores, labels))
    ref = _reference(scores, labels)
    assert jnp.allclose(loss, ref, rtol=2e-5, atol=1e-6), (loss, ref)

    # Multi-tile / parallel-grid path.
    loss_tiled = jax.block_until_ready(weighted_bce_loss(scores, labels, tile_b=64))
    assert jnp.allclose(loss_tiled, ref, rtol=2e-5, atol=1e-6), (loss_tiled, ref)

    # 'sum' reduction with non-default hyper-parameters.
    loss_sum = jax.block_until_ready(
        weighted_bce_loss(scores, labels, reduction="sum",
                          temperature=2.0, scaling_factor=10.0, pos_weight=3.0))
    ref_sum = _reference(scores, labels, reduction="sum",
                         temperature=2.0, scaling_factor=10.0, pos_weight=3.0)
    assert jnp.allclose(loss_sum, ref_sum, rtol=2e-5, atol=1e-6), (loss_sum, ref_sum)

    print("KERNEL_OK")
</pallas_src>

<mosaic_0001>
module attributes {stable_mosaic.version = 11 : i64} {
  func.func @_wbce_partial_kernel(%arg0: i32, %arg1: memref<512x128xf32, #tpu.memory_space<vmem>>, %arg2: memref<512x128xf32, #tpu.memory_space<vmem>>, %arg3: memref<1x8x128xf32, #tpu.memory_space<vmem>>) attributes {dimension_semantics = [#tpu.dimension_semantics<parallel>], iteration_bounds = array<i64: 1>, scalar_prefetch = 0 : i64, scratch_operands = 0 : i64, tpu.core_type = #tpu.core_type<tc>, window_params = [{transform_indices = @transform_0, window_bounds = array<i64: 512, 128>}, {transform_indices = @transform_1, window_bounds = array<i64: 512, 128>}, {transform_indices = @transform_2, window_bounds = array<i64: 1, 8, 128>}]} {
    %c0 = arith.constant 0 : index
    %c0_0 = arith.constant 0 : index
    %0 = vector.load %arg1[%c0, %c0_0] : memref<512x128xf32, #tpu.memory_space<vmem>>, vector<512x128xf32>
    %cst = arith.constant 4.000000e-02 : f32
    %1 = vector.broadcast %cst : f32 to vector<512x128xf32>
    %2 = arith.mulf %0, %1 : vector<512x128xf32>
    %c0_1 = arith.constant 0 : index
    %c0_2 = arith.constant 0 : index
    %3 = vector.load %arg2[%c0_1, %c0_2] : memref<512x128xf32, #tpu.memory_space<vmem>>, vector<512x128xf32>
    %cst_3 = arith.constant 7.000000e+00 : f32
    %4 = vector.broadcast %cst_3 : f32 to vector<512x128xf32>
    %5 = arith.mulf %4, %3 : vector<512x128xf32>
    %cst_4 = arith.constant 1.000000e+00 : f32
    %6 = vector.broadcast %cst_4 : f32 to vector<512x128xf32>
    %7 = arith.addf %6, %5 : vector<512x128xf32>
    %cst_5 = arith.constant 0.000000e+00 : f32
    %8 = vector.broadcast %cst_5 : f32 to vector<512x128xf32>
    %9 = arith.subf %8, %2 : vector<512x128xf32>
    %cst_6 = arith.constant 0.000000e+00 : f32
    %10 = vector.broadcast %cst_6 : f32 to vector<512x128xf32>
    %11 = arith.maximumf %9, %10 : vector<512x128xf32>
    %12 = math.absf %2 : vector<512x128xf32>
    %cst_7 = arith.constant 0.000000e+00 : f32
    %13 = vector.broadcast %cst_7 : f32 to vector<512x128xf32>
    %14 = arith.subf %13, %12 : vector<512x128xf32>
    %15 = math.exp %14 : vector<512x128xf32>
    %16 = math.log1p %15 : vector<512x128xf32>
    %17 = arith.addf %11, %16 : vector<512x128xf32>
    %cst_8 = arith.constant 1.000000e+00 : f32
    %18 = vector.broadcast %cst_8 : f32 to vector<512x128xf32>
    %19 = arith.subf %18, %3 : vector<512x128xf32>
    %20 = arith.mulf %19, %2 : vector<512x128xf32>
    %21 = arith.mulf %7, %17 : vector<512x128xf32>
    %22 = arith.addf %20, %21 : vector<512x128xf32>
    %23 = vector.shape_cast %22 : vector<512x128xf32> to vector<1x512x128xf32>
    %cst_9 = arith.constant dense<0.000000e+00> : vector<1xf32>
    %24 = vector.multi_reduction <add>, %23, %cst_9 [1, 2] : vector<1x512x128xf32> to vector<1xf32>
    %25 = vector.shape_cast %24 : vector<1xf32> to vector<1x1x1xf32>
    %26 = vector.extract %25[0, 0, 0] : f32 from vector<1x1x1xf32>
    %27 = vector.broadcast %26 : f32 to vector<1x8x128xf32>
    %c0_10 = arith.constant 0 : index
    %c0_11 = arith.constant 0 : index
    %c0_12 = arith.constant 0 : index
    %28 = vector.load %arg3[%c0_10, %c0_11, %c0_12] : memref<1x8x128xf32, #tpu.memory_space<vmem>>, vector<1x8x128xf32>
    tpu.vector_store %arg3[%c0_10, %c0_11, %c0_12], %27 {strides = array<i32>} : memref<1x8x128xf32, #tpu.memory_space<vmem>>, vector<1x8x128xf32>,
    return
  }
  func.func @transform_0(%arg0: i32) -> (i32, i32) {
    %c0_i32 = arith.constant 0 : i32
    %c0_i32_0 = arith.constant 0 : i32
    return %arg0, %c0_i32 : i32, i32
  }
  func.func @transform_1(%arg0: i32) -> (i32, i32) {
    %c0_i32 = arith.constant 0 : i32
    %c0_i32_0 = arith.constant 0 : i32
    return %arg0, %c0_i32 : i32, i32
  }
  func.func @transform_2(%arg0: i32) -> (i32, i32, i32) {
    %c0_i32 = arith.constant 0 : i32
    %c0_i32_0 = arith.constant 0 : i32
    %c0_i32_1 = arith.constant 0 : i32
    return %arg0, %c0_i32, %c0_i32_0 : i32, i32, i32
  }
}

</mosaic_0001>

<llo_original>
// kernel: tpu_custom_call.1
$region0: #{tpu_custom_call.1}
  #allocation0 [shape = 'u32[]', space=smem, size = 0x4, offset = 0x4, fixed_abs, tag = 'smem constant byte address 0x4 - core index']
  #allocation1 [shape = 'u32[144,128]{1,0:T(1,128)}', space=vmem, size = 0x12000, scoped, tag = 'internal scratch']
  %s0 = inlined_call_operand.hbm [shape: f32[512,128], index: 0, kind: input, shape index: {}]
  %s1 = inlined_call_operand.hbm [shape: f32[512,128], index: 1, kind: input, shape index: {}]
  %s2 = inlined_call_operand.hbm [shape: f32[1,8,128], index: 2, kind: output, shape index: {}]
  %s3 = sld [smem:[#allocation0]]
  $region26: #{tpu_custom_call.1} parent=0
    _
  %s5 = ssub.s32 1, %s3
  %s6 = scalar_select 0, %s5, %s3
  $region1: #{tpu_custom_call.1} parent=0
    #allocation2 [shape = 'u8[262144]{0}', space=vmem, size = 0x40000, scoped, tag = 'input window, operand 0, single buffered']
    #allocation3 [shape = 's32[1]{0}', space=sflag, size = 0x4, scoped, tag = 'scoped memory for tpu_custom_call.1']
    #allocation4 [shape = 's32[1]{0}', space=sflag, size = 0x4, scoped, tag = 'scoped memory for tpu_custom_call.1']
    #allocation5 [shape = 'u8[262144]{0}', space=vmem, size = 0x40000, scoped, tag = 'input window, operand 1, single buffered']
    #allocation6 [shape = 's32[1]{0}', space=sflag, size = 0x4, scoped, tag = 'scoped memory for tpu_custom_call.1']
    #allocation7 [shape = 'u8[4096]{0}', space=vmem, size = 0x1000, scoped, tag = 'output window, operand 0, single buffered']
    %7 = vsyncpa [#allocation3], 0
    %8 = vsyncpa [#allocation6], 0
    %9 = vsyncpa [#allocation4], 0
    // Predicated region
    $region2: #{tpu_custom_call.1} parent=1 // pred_check
      _
    $region3: #{tpu_custom_call.1} parent=1 // pred_check_branch
      %11 = sbr.rel (0) target = $region5
    $region4: #{tpu_custom_call.1} parent=1 // pred_region
      %s13 = ssub.s32 8192, 8192
      %14 = vsyncadd [#allocation3], %s13
      %s15 = sshll.u32 [#allocation2], 4
      %s16 = int_to_ptr.vmem [resolvable:$true] %s15
      %21 = dma.hbm_to_vmem [thread:$0]  %s0, 8192, %s16, [#allocation3], 128, 128, 8
    $region5: #{tpu_custom_call.1} parent=1 // pred_fallthru
      _
    // Predicated region
    $region6: #{tpu_custom_call.1} parent=1 // pred_check
      _
    $region7: #{tpu_custom_call.1} parent=1 // pred_check_branch
      %23 = sbr.rel (0) target = $region9
    $region8: #{tpu_custom_call.1} parent=1 // pred_region
      %s25 = ssub.s32 8192, 8192
      %26 = vsyncadd [#allocation6], %s25
      %s27 = sshll.u32 [#allocation5], 4
      %s28 = int_to_ptr.vmem [resolvable:$true] %s27
      %33 = dma.hbm_to_vmem [thread:$0]  %s1, 8192, %s28, [#allocation6], 128, 128, 8
    $region9: #{tpu_custom_call.1} parent=1 // pred_fallthru
      _
    // Predicated region
    $region10: #{tpu_custom_call.1} parent=1 // pred_check
      _
    $region11: #{tpu_custom_call.1} parent=1 // pred_check_branch
      %35 = sbr.rel (0) target = $region13
    $region12: #{tpu_custom_call.1} parent=1 // pred_region
      %36 = dma.done [#allocation3], 8192
    $region13: #{tpu_custom_call.1} parent=1 // pred_fallthru
      _
    // Predicated region
    $region14: #{tpu_custom_call.1} parent=1 // pred_check
      _
    $region15: #{tpu_custom_call.1} parent=1 // pred_check_branch
      %38 = sbr.rel (0) target = $region17
    $region16: #{tpu_custom_call.1} parent=1 // pred_region
      %39 = dma.done [#allocation6], 8192
    $region17: #{tpu_custom_call.1} parent=1 // pred_fallthru
      _
    %v40 = vld [vmem:[#allocation2] sm:$0xff]
    %v41 = vld [vmem:[#allocation2 + $0x8] sm:$0xff]
    %v42 = vld [vmem:[#allocation2 + $0x10] sm:$0xff]
    %v43 = vld [vmem:[#allocation2 + $0x18] sm:$0xff]
    %v44 = vld [vmem:[#allocation2 + $0x20] sm:$0xff]
    %v45 = vld [vmem:[#allocation2 + $0x28] sm:$0xff]
    %v46 = vld [vmem:[#allocation2 + $0x30] sm:$0xff]
    %v47 = vld [vmem:[#allocation2 + $0x38] sm:$0xff]
    %v48 = vld [vmem:[#allocation2 + $0x40] sm:$0xff]
    %v49 = vld [vmem:[#allocation2 + $0x48] sm:$0xff]
    %v50 = vld [vmem:[#allocation2 + $0x50] sm:$0xff]
    %v51 = vld [vmem:[#allocation2 + $0x58] sm:$0xff]
    %v52 = vld [vmem:[#allocation2 + $0x60] sm:$0xff]
    %v53 = vld [vmem:[#allocation2 + $0x68] sm:$0xff]
    %v54 = vld [vmem:[#allocation2 + $0x70] sm:$0xff]
    %v55 = vld [vmem:[#allocation2 + $0x78] sm:$0xff]
    %v56 = vld [vmem:[#allocation2 + $0x80] sm:$0xff]
    %v57 = vld [vmem:[#allocation2 + $0x88] sm:$0xff]
    %v58 = vld [vmem:[#allocation2 + $0x90] sm:$0xff]
    %v59 = vld [vmem:[#allocation2 + $0x98] sm:$0xff]
    %v60 = vld [vmem:[#allocation2 + $0xa0] sm:$0xff]
    %v61 = vld [vmem:[#allocation2 + $0xa8] sm:$0xff]
    %v62 = vld [vmem:[#allocation2 + $0xb0] sm:$0xff]
    %v63 = vld [vmem:[#allocation2 + $0xb8] sm:$0xff]
    %v64 = vld [vmem:[#allocation2 + $0xc0] sm:$0xff]
    %v65 = vld [vmem:[#allocation2 + $0xc8] sm:$0xff]
    %v66 = vld [vmem:[#allocation2 + $0xd0] sm:$0xff]
    %v67 = vld [vmem:[#allocation2 + $0xd8] sm:$0xff]
    %v68 = vld [vmem:[#allocation2 + $0xe0] sm:$0xff]
    %v69 = vld [vmem:[#allocation2 + $0xe8] sm:$0xff]
    %v70 = vld [vmem:[#allocation2 + $0xf0] sm:$0xff]
    %v71 = vld [vmem:[#allocation2 + $0xf8] sm:$0xff]
    %v72 = vld [vmem:[#allocation2 + $0x100] sm:$0xff]
    %v73 = vld [vmem:[#allocation2 + $0x108] sm:$0xff]
    %v74 = vld [vmem:[#allocation2 + $0x110] sm:$0xff]
    %v75 = vld [vmem:[#allocation2 + $0x118] sm:$0xff]
    %v76 = vld [vmem:[#allocation2 + $0x120] sm:$0xff]
    %v77 = vld [vmem:[#allocation2 + $0x128] sm:$0xff]
    %v78 = vld [vmem:[#allocation2 + $0x130] sm:$0xff]
    %v79 = vld [vmem:[#allocation2 + $0x138] sm:$0xff]
    %v80 = vld [vmem:[#allocation2 + $0x140] sm:$0xff]
    %v81 = vld [vmem:[#allocation2 + $0x148] sm:$0xff]
    %v82 = vld [vmem:[#allocation2 + $0x150] sm:$0xff]
    %v83 = vld [vmem:[#allocation2 + $0x158] sm:$0xff]
    %v84 = vld [vmem:[#allocation2 + $0x160] sm:$0xff]
    %v85 = vld [vmem:[#allocation2 + $0x168] sm:$0xff]
    %v86 = vld [vmem:[#allocation2 + $0x170] sm:$0xff]
    %v87 = vld [vmem:[#allocation2 + $0x178] sm:$0xff]
    %v88 = vld [vmem:[#allocation2 + $0x180] sm:$0xff]
    %v89 = vld [vmem:[#allocation2 + $0x188] sm:$0xff]
    %v90 = vld [vmem:[#allocation2 + $0x190] sm:$0xff]
    %v91 = vld [vmem:[#allocation2 + $0x198] sm:$0xff]
    %v92 = vld [vmem:[#allocation2 + $0x1a0] sm:$0xff]
    %v93 = vld [vmem:[#allocation2 + $0x1a8] sm:$0xff]
    %v94 = vld [vmem:[#allocation2 + $0x1b0] sm:$0xff]
    %v95 = vld [vmem:[#allocation2 + $0x1b8] sm:$0xff]
    %v96 = vld [vmem:[#allocation2 + $0x1c0] sm:$0xff]
    %v97 = vld [vmem:[#allocation2 + $0x1c8] sm:$0xff]
    %v98 = vld [vmem:[#allocation2 + $0x1d0] sm:$0xff]
    %v99 = vld [vmem:[#allocation2 + $0x1d8] sm:$0xff]
    %v100 = vld [vmem:[#allocation2 + $0x1e0] sm:$0xff]
    %v101 = vld [vmem:[#allocation2 + $0x1e8] sm:$0xff]
    %v102 = vld [vmem:[#allocation2 + $0x1f0] sm:$0xff]
    %v103 = vld [vmem:[#allocation2 + $0x1f8] sm:$0xff]
    %v104 = vmul.f32 %v40, 0.04
    %v105 = vmul.f32 %v41, 0.04
    %v106 = vmul.f32 %v42, 0.04
    %v107 = vmul.f32 %v43, 0.04
    %v108 = vmul.f32 %v44, 0.04
    %v109 = vmul.f32 %v45, 0.04
    %v110 = vmul.f32 %v46, 0.04
    %v111 = vmul.f32 %v47, 0.04
    %v112 = vmul.f32 %v48, 0.04
    %v113 = vmul.f32 %v49, 0.04
    %v114 = vmul.f32 %v50, 0.04
    %v115 = vmul.f32 %v51, 0.04
    %v116 = vmul.f32 %v52, 0.04
    %v117 = vmul.f32 %v53, 0.04
    %v118 = vmul.f32 %v54, 0.04
    %v119 = vmul.f32 %v55, 0.04
    %v120 = vmul.f32 %v56, 0.04
    %v121 = vmul.f32 %v57, 0.04
    %v122 = vmul.f32 %v58, 0.04
    %v123 = vmul.f32 %v59, 0.04
    %v124 = vmul.f32 %v60, 0.04
    %v125 = vmul.f32 %v61, 0.04
    %v126 = vmul.f32 %v62, 0.04
    %v127 = vmul.f32 %v63, 0.04
    %v128 = vmul.f32 %v64, 0.04
    %v129 = vmul.f32 %v65, 0.04
    %v130 = vmul.f32 %v66, 0.04
    %v131 = vmul.f32 %v67, 0.04
    %v132 = vmul.f32 %v68, 0.04
    %v133 = vmul.f32 %v69, 0.04
    %v134 = vmul.f32 %v70, 0.04
    %v135 = vmul.f32 %v71, 0.04
    %v136 = vmul.f32 %v72, 0.04
    %v137 = vmul.f32 %v73, 0.04
    %v138 = vmul.f32 %v74, 0.04
    %v139 = vmul.f32 %v75, 0.04
    %v140 = vmul.f32 %v76, 0.04
    %v141 = vmul.f32 %v77, 0.04
    %v142 = vmul.f32 %v78, 0.04
    %v143 = vmul.f32 %v79, 0.04
    %v144 = vmul.f32 %v80, 0.04
    %v145 = vmul.f32 %v81, 0.04
    %v146 = vmul.f32 %v82, 0.04
    %v147 = vmul.f32 %v83, 0.04
    %v148 = vmul.f32 %v84, 0.04
    %v149 = vmul.f32 %v85, 0.04
    %v150 = vmul.f32 %v86, 0.04
    %v151 = vmul.f32 %v87, 0.04
    %v152 = vmul.f32 %v88, 0.04
    %v153 = vmul.f32 %v89, 0.04
    %v154 = vmul.f32 %v90, 0.04
    %v155 = vmul.f32 %v91, 0.04
    %v156 = vmul.f32 %v92, 0.04
    %v157 = vmul.f32 %v93, 0.04
    %v158 = vmul.f32 %v94, 0.04
    %v159 = vmul.f32 %v95, 0.04
    %v160 = vmul.f32 %v96, 0.04
    %v161 = vmul.f32 %v97, 0.04
    %v162 = vmul.f32 %v98, 0.04
    %v163 = vmul.f32 %v99, 0.04
    %v164 = vmul.f32 %v100, 0.04
    %v165 = vmul.f32 %v101, 0.04
    %v166 = vmul.f32 %v102, 0.04
    %v167 = vmul.f32 %v103, 0.04
    %v168 = vld [vmem:[#allocation5] sm:$0xff]
    %v169 = vld [vmem:[#allocation5 + $0x8] sm:$0xff]
    %v170 = vld [vmem:[#allocation5 + $0x10] sm:$0xff]
    %v171 = vld [vmem:[#allocation5 + $0x18] sm:$0xff]
    %v172 = vld [vmem:[#allocation5 + $0x20] sm:$0xff]
    %v173 = vld [vmem:[#allocation5 + $0x28] sm:$0xff]
    %v174 = vld [vmem:[#allocation5 + $0x30] sm:$0xff]
    %v175 = vld [vmem:[#allocation5 + $0x38] sm:$0xff]
    %v176 = vld [vmem:[#allocation5 + $0x40] sm:$0xff]
    %v177 = vld [vmem:[#allocation5 + $0x48] sm:$0xff]
    %v178 = vld [vmem:[#allocation5 + $0x50] sm:$0xff]
    %v179 = vld [vmem:[#allocation5 + $0x58] sm:$0xff]
    %v180 = vld [vmem:[#allocation5 + $0x60] sm:$0xff]
    %v181 = vld [vmem:[#allocation5 + $0x68] sm:$0xff]
    %v182 = vld [vmem:[#allocation5 + $0x70] sm:$0xff]
    %v183 = vld [vmem:[#allocation5 + $0x78] sm:$0xff]
    %v184 = vld [vmem:[#allocation5 + $0x80] sm:$0xff]
    %v185 = vld [vmem:[#allocation5 + $0x88] sm:$0xff]
    %v186 = vld [vmem:[#allocation5 + $0x90] sm:$0xff]
    %v187 = vld [vmem:[#allocation5 + $0x98] sm:$0xff]
    %v188 = vld [vmem:[#allocation5 + $0xa0] sm:$0xff]
    %v189 = vld [vmem:[#allocation5 + $0xa8] sm:$0xff]
    %v190 = vld [vmem:[#allocation5 + $0xb0] sm:$0xff]
    %v191 = vld [vmem:[#allocation5 + $0xb8] sm:$0xff]
    %v192 = vld [vmem:[#allocation5 + $0xc0] sm:$0xff]
    %v193 = vld [vmem:[#allocation5 + $0xc8] sm:$0xff]
    %v194 = vld [vmem:[#allocation5 + $0xd0] sm:$0xff]
    %v195 = vld [vmem:[#allocation5 + $0xd8] sm:$0xff]
    %v196 = vld [vmem:[#allocation5 + $0xe0] sm:$0xff]
    %v197 = vld [vmem:[#allocation5 + $0xe8] sm:$0xff]
    %v198 = vld [vmem:[#allocation5 + $0xf0] sm:$0xff]
    %v199 = vld [vmem:[#allocation5 + $0xf8] sm:$0xff]
    %v200 = vld [vmem:[#allocation5 + $0x100] sm:$0xff]
    %v201 = vld [vmem:[#allocation5 + $0x108] sm:$0xff]
    %v202 = vld [vmem:[#allocation5 + $0x110] sm:$0xff]
    %v203 = vld [vmem:[#allocation5 + $0x118] sm:$0xff]
    %v204 = vld [vmem:[#allocation5 + $0x120] sm:$0xff]
    %v205 = vld [vmem:[#allocation5 + $0x128] sm:$0xff]
    %v206 = vld [vmem:[#allocation5 + $0x130] sm:$0xff]
    %v207 = vld [vmem:[#allocation5 + $0x138] sm:$0xff]
    %v208 = vld [vmem:[#allocation5 + $0x140] sm:$0xff]
    %v209 = vld [vmem:[#allocation5 + $0x148] sm:$0xff]
    %v210 = vld [vmem:[#allocation5 + $0x150] sm:$0xff]
    %v211 = vld [vmem:[#allocation5 + $0x158] sm:$0xff]
    %v212 = vld [vmem:[#allocation5 + $0x160] sm:$0xff]
    %v213 = vld [vmem:[#allocation5 + $0x168] sm:$0xff]
    %v214 = vld [vmem:[#allocation5 + $0x170] sm:$0xff]
    %v215 = vld [vmem:[#allocation5 + $0x178] sm:$0xff]
    %v216 = vld [vmem:[#allocation5 + $0x180] sm:$0xff]
    %v217 = vld [vmem:[#allocation5 + $0x188] sm:$0xff]
    %v218 = vld [vmem:[#allocation5 + $0x190] sm:$0xff]
    %v219 = vld [vmem:[#allocation5 + $0x198] sm:$0xff]
    %v220 = vld [vmem:[#allocation5 + $0x1a0] sm:$0xff]
    %v221 = vld [vmem:[#allocation5 + $0x1a8] sm:$0xff]
    %v222 = vld [vmem:[#allocation5 + $0x1b0] sm:$0xff]
    %v223 = vld [vmem:[#allocation5 + $0x1b8] sm:$0xff]
    %v224 = vld [vmem:[#allocation5 + $0x1c0] sm:$0xff]
    %v225 = vld [vmem:[#allocation5 + $0x1c8] sm:$0xff]
    %v226 = vld [vmem:[#allocation5 + $0x1d0] sm:$0xff]
    %v227 = vld [vmem:[#allocation5 + $0x1d8] sm:$0xff]
    %v228 = vld [vmem:[#allocation5 + $0x1e0] sm:$0xff]
    %v229 = vld [vmem:[#allocation5 + $0x1e8] sm:$0xff]
    %v230 = vld [vmem:[#allocation5 + $0x1f0] sm:$0xff]
    %v231 = vld [vmem:[#allocation5 + $0x1f8] sm:$0xff]
    %v232 = vmul.f32 %v168, 7.0
    %v233 = vmul.f32 %v169, 7.0
    %v234 = vmul.f32 %v170, 7.0
    %v235 = vmul.f32 %v171, 7.0
    %v236 = vmul.f32 %v172, 7.0
    %v237 = vmul.f32 %v173, 7.0
    %v238 = vmul.f32 %v174, 7.0
    %v239 = vmul.f32 %v175, 7.0
    %v240 = vmul.f32 %v176, 7.0
    %v241 = vmul.f32 %v177, 7.0
    %v242 = vmul.f32 %v178, 7.0
    %v243 = vmul.f32 %v179, 7.0
    %v244 = vmul.f32 %v180, 7.0
    %v245 = vmul.f32 %v181, 7.0
    %v246 = vmul.f32 %v182, 7.0
    %v247 = vmul.f32 %v183, 7.0
    %v248 = vmul.f32 %v184, 7.0
    %v249 = vmul.f32 %v185, 7.0
    %v250 = vmul.f32 %v186, 7.0
    %v251 = vmul.f32 %v187, 7.0
    %v252 = vmul.f32 %v188, 7.0
    %v253 = vmul.f32 %v189, 7.0
    %v254 = vmul.f32 %v190, 7.0
    %v255 = vmul.f32 %v191, 7.0
    %v256 = vmul.f32 %v192, 7.0
    %v257 = vmul.f32 %v193, 7.0
    %v258 = vmul.f32 %v194, 7.0
    %v259 = vmul.f32 %v195, 7.0
    %v260 = vmul.f32 %v196, 7.0
    %v261 = vmul.f32 %v197, 7.0
    %v262 = vmul.f32 %v198, 7.0
    %v263 = vmul.f32 %v199, 7.0
    %v264 = vmul.f32 %v200, 7.0
    %v265 = vmul.f32 %v201, 7.0
    %v266 = vmul.f32 %v202, 7.0
    %v267 = vmul.f32 %v203, 7.0
    %v268 = vmul.f32 %v204, 7.0
    %v269 = vmul.f32 %v205, 7.0
    %v270 = vmul.f32 %v206, 7.0
    %v271 = vmul.f32 %v207, 7.0
    %v272 = vmul.f32 %v208, 7.0
    %v273 = vmul.f32 %v209, 7.0
    %v274 = vmul.f32 %v210, 7.0
    %v275 = vmul.f32 %v211, 7.0
    %v276 = vmul.f32 %v212, 7.0
    %v277 = vmul.f32 %v213, 7.0
    %v278 = vmul.f32 %v214, 7.0
    %v279 = vmul.f32 %v215, 7.0
    %v280 = vmul.f32 %v216, 7.0
    %v281 = vmul.f32 %v217, 7.0
    %v282 = vmul.f32 %v218, 7.0
    %v283 = vmul.f32 %v219, 7.0
    %v284 = vmul.f32 %v220, 7.0
    %v285 = vmul.f32 %v221, 7.0
    %v286 = vmul.f32 %v222, 7.0
    %v287 = vmul.f32 %v223, 7.0
    %v288 = vmul.f32 %v224, 7.0
    %v289 = vmul.f32 %v225, 7.0
    %v290 = vmul.f32 %v226, 7.0
    %v291 = vmul.f32 %v227, 7.0
    %v292 = vmul.f32 %v228, 7.0
    %v293 = vmul.f32 %v229, 7.0
    %v294 = vmul.f32 %v230, 7.0
    %v295 = vmul.f32 %v231, 7.0
    %v296 = vadd.f32 %v232, 1.0
    %v297 = vadd.f32 %v233, 1.0
    %v298 = vadd.f32 %v234, 1.0
    %v299 = vadd.f32 %v235, 1.0
    %v300 = vadd.f32 %v236, 1.0
    %v301 = vadd.f32 %v237, 1.0
    %v302 = vadd.f32 %v238, 1.0
    %v303 = vadd.f32 %v239, 1.0
    %v304 = vadd.f32 %v240, 1.0
    %v305 = vadd.f32 %v241, 1.0
    %v306 = vadd.f32 %v242, 1.0
    %v307 = vadd.f32 %v243, 1.0
    %v308 = vadd.f32 %v244, 1.0
    %v309 = vadd.f32 %v245, 1.0
    %v310 = vadd.f32 %v246, 1.0
    %v311 = vadd.f32 %v247, 1.0
    %v312 = vadd.f32 %v248, 1.0
    %v313 = vadd.f32 %v249, 1.0
    %v314 = vadd.f32 %v250, 1.0
    %v315 = vadd.f32 %v251, 1.0
    %v316 = vadd.f32 %v252, 1.0
    %v317 = vadd.f32 %v253, 1.0
    %v318 = vadd.f32 %v254, 1.0
    %v319 = vadd.f32 %v255, 1.0
    %v320 = vadd.f32 %v256, 1.0
    %v321 = vadd.f32 %v257, 1.0
    %v322 = vadd.f32 %v258, 1.0
    %v323 = vadd.f32 %v259, 1.0
    %v324 = vadd.f32 %v260, 1.0
    %v325 = vadd.f32 %v261, 1.0
    %v326 = vadd.f32 %v262, 1.0
    %v327 = vadd.f32 %v263, 1.0
    %v328 = vadd.f32 %v264, 1.0
    %v329 = vadd.f32 %v265, 1.0
    %v330 = vadd.f32 %v266, 1.0
    %v331 = vadd.f32 %v267, 1.0
    %v332 = vadd.f32 %v268, 1.0
    %v333 = vadd.f32 %v269, 1.0
    %v334 = vadd.f32 %v270, 1.0
    %v335 = vadd.f32 %v271, 1.0
    %v336 = vadd.f32 %v272, 1.0
    %v337 = vadd.f32 %v273, 1.0
    %v338 = vadd.f32 %v274, 1.0
    %v339 = vadd.f32 %v275, 1.0
    %v340 = vadd.f32 %v276, 1.0
    %v341 = vadd.f32 %v277, 1.0
    %v342 = vadd.f32 %v278, 1.0
    %v343 = vadd.f32 %v279, 1.0
    %v344 = vadd.f32 %v280, 1.0
    %v345 = vadd.f32 %v281, 1.0
    %v346 = vadd.f32 %v282, 1.0
    %v347 = vadd.f32 %v283, 1.0
    %v348 = vadd.f32 %v284, 1.0
    %v349 = vadd.f32 %v285, 1.0
    %v350 = vadd.f32 %v286, 1.0
    %v351 = vadd.f32 %v287, 1.0
    %v352 = vadd.f32 %v288, 1.0
    %v353 = vadd.f32 %v289, 1.0
    %v354 = vadd.f32 %v290, 1.0
    %v355 = vadd.f32 %v291, 1.0
    %v356 = vadd.f32 %v292, 1.0
    %v357 = vadd.f32 %v293, 1.0
    %v358 = vadd.f32 %v294, 1.0
    %v359 = vadd.f32 %v295, 1.0
    %v360 = vsub.f32 0.0, %v104
    %v361 = vsub.f32 0.0, %v105
    %v362 = vsub.f32 0.0, %v106
    %v363 = vsub.f32 0.0, %v107
    %v364 = vsub.f32 0.0, %v108
    %v365 = vsub.f32 0.0, %v109
    %v366 = vsub.f32 0.0, %v110
    %v367 = vsub.f32 0.0, %v111
    %v368 = vsub.f32 0.0, %v112
    %v369 = vsub.f32 0.0, %v113
    %v370 = vsub.f32 0.0, %v114
    %v371 = vsub.f32 0.0, %v115
    %v372 = vsub.f32 0.0, %v116
    %v373 = vsub.f32 0.0, %v117
    %v374 = vsub.f32 0.0, %v118
    %v375 = vsub.f32 0.0, %v119
    %v376 = vsub.f32 0.0, %v120
    %v377 = vsub.f32 0.0, %v121
    %v378 = vsub.f32 0.0, %v122
    %v379 = vsub.f32 0.0, %v123
    %v380 = vsub.f32 0.0, %v124
    %v381 = vsub.f32 0.0, %v125
    %v382 = vsub.f32 0.0, %v126
    %v383 = vsub.f32 0.0, %v127
    %v384 = vsub.f32 0.0, %v128
    %v385 = vsub.f32 0.0, %v129
    %v386 = vsub.f32 0.0, %v130
    %v387 = vsub.f32 0.0, %v131
    %v388 = vsub.f32 0.0, %v132
    %v389 = vsub.f32 0.0, %v133
    %v390 = vsub.f32 0.0, %v134
    %v391 = vsub.f32 0.0, %v135
    %v392 = vsub.f32 0.0, %v136
    %v393 = vsub.f32 0.0, %v137
    %v394 = vsub.f32 0.0, %v138
    %v395 = vsub.f32 0.0, %v139
    %v396 = vsub.f32 0.0, %v140
    %v397 = vsub.f32 0.0, %v141
    %v398 = vsub.f32 0.0, %v142
    %v399 = vsub.f32 0.0, %v143
    %v400 = vsub.f32 0.0, %v144
    %v401 = vsub.f32 0.0, %v145
    %v402 = vsub.f32 0.0, %v146
    %v403 = vsub.f32 0.0, %v147
    %v404 = vsub.f32 0.0, %v148
    %v405 = vsub.f32 0.0, %v149
    %v406 = vsub.f32 0.0, %v150
    %v407 = vsub.f32 0.0, %v151
    %v408 = vsub.f32 0.0, %v152
    %v409 = vsub.f32 0.0, %v153
    %v410 = vsub.f32 0.0, %v154
    %v411 = vsub.f32 0.0, %v155
    %v412 = vsub.f32 0.0, %v156
    %v413 = vsub.f32 0.0, %v157
    %v414 = vsub.f32 0.0, %v158
    %v415 = vsub.f32 0.0, %v159
    %v416 = vsub.f32 0.0, %v160
    %v417 = vsub.f32 0.0, %v161
    %v418 = vsub.f32 0.0, %v162
    %v419 = vsub.f32 0.0, %v163
    %v420 = vsub.f32 0.0, %v164
    %v421 = vsub.f32 0.0, %v165
    %v422 = vsub.f32 0.0, %v166
    %v423 = vsub.f32 0.0, %v167
    %v424 = vmax.f32 %v360, 0.0
    %v425 = vmax.f32 %v361, 0.0
    %v426 = vmax.f32 %v362, 0.0
    %v427 = vmax.f32 %v363, 0.0
    %v428 = vmax.f32 %v364, 0.0
    %v429 = vmax.f32 %v365, 0.0
    %v430 = vmax.f32 %v366, 0.0
    %v431 = vmax.f32 %v367, 0.0
    %v432 = vmax.f32 %v368, 0.0
    %v433 = vmax.f32 %v369, 0.0
    %v434 = vmax.f32 %v370, 0.0
    %v435 = vmax.f32 %v371, 0.0
    %v436 = vmax.f32 %v372, 0.0
    %v437 = vmax.f32 %v373, 0.0
    %v438 = vmax.f32 %v374, 0.0
    %v439 = vmax.f32 %v375, 0.0
    %v440 = vmax.f32 %v376, 0.0
    %v441 = vmax.f32 %v377, 0.0
    %v442 = vmax.f32 %v378, 0.0
    %v443 = vmax.f32 %v379, 0.0
    %v444 = vmax.f32 %v380, 0.0
    %v445 = vmax.f32 %v381, 0.0
    %v446 = vmax.f32 %v382, 0.0
    %v447 = vmax.f32 %v383, 0.0
    %v448 = vmax.f32 %v384, 0.0
    %v449 = vmax.f32 %v385, 0.0
    %v450 = vmax.f32 %v386, 0.0
    %v451 = vmax.f32 %v387, 0.0
    %v452 = vmax.f32 %v388, 0.0
    %v453 = vmax.f32 %v389, 0.0
    %v454 = vmax.f32 %v390, 0.0
    %v455 = vmax.f32 %v391, 0.0
    %v456 = vmax.f32 %v392, 0.0
    %v457 = vmax.f32 %v393, 0.0
    %v458 = vmax.f32 %v394, 0.0
    %v459 = vmax.f32 %v395, 0.0
    %v460 = vmax.f32 %v396, 0.0
    %v461 = vmax.f32 %v397, 0.0
    %v462 = vmax.f32 %v398, 0.0
    %v463 = vmax.f32 %v399, 0.0
    %v464 = vmax.f32 %v400, 0.0
    %v465 = vmax.f32 %v401, 0.0
    %v466 = vmax.f32 %v402, 0.0
    %v467 = vmax.f32 %v403, 0.0
    %v468 = vmax.f32 %v404, 0.0
    %v469 = vmax.f32 %v405, 0.0
    %v470 = vmax.f32 %v406, 0.0
    %v471 = vmax.f32 %v407, 0.0
    %v472 = vmax.f32 %v408, 0.0
    %v473 = vmax.f32 %v409, 0.0
    %v474 = vmax.f32 %v410, 0.0
    %v475 = vmax.f32 %v411, 0.0
    %v476 = vmax.f32 %v412, 0.0
    %v477 = vmax.f32 %v413, 0.0
    %v478 = vmax.f32 %v414, 0.0
    %v479 = vmax.f32 %v415, 0.0
    %v480 = vmax.f32 %v416, 0.0
    %v481 = vmax.f32 %v417, 0.0
    %v482 = vmax.f32 %v418, 0.0
    %v483 = vmax.f32 %v419, 0.0
    %v484 = vmax.f32 %v420, 0.0
    %v485 = vmax.f32 %v421, 0.0
    %v486 = vmax.f32 %v422, 0.0
    %v487 = vmax.f32 %v423, 0.0
    %v488 = vand.u32 2147483647, %v104
    %v489 = vand.u32 2147483647, %v105
    %v490 = vand.u32 2147483647, %v106
    %v491 = vand.u32 2147483647, %v107
    %v492 = vand.u32 2147483647, %v108
    %v493 = vand.u32 2147483647, %v109
    %v494 = vand.u32 2147483647, %v110
    %v495 = vand.u32 2147483647, %v111
    %v496 = vand.u32 2147483647, %v112
    %v497 = vand.u32 2147483647, %v113
    %v498 = vand.u32 2147483647, %v114
    %v499 = vand.u32 2147483647, %v115
    %v500 = vand.u32 2147483647, %v116
    %v501 = vand.u32 2147483647, %v117
    %v502 = vand.u32 2147483647, %v118
    %v503 = vand.u32 2147483647, %v119
    %v504 = vand.u32 2147483647, %v120
    %v505 = vand.u32 2147483647, %v121
    %v506 = vand.u32 2147483647, %v122
    %v507 = vand.u32 2147483647, %v123
    %v508 = vand.u32 2147483647, %v124
    %v509 = vand.u32 2147483647, %v125
    %v510 = vand.u32 2147483647, %v126
    %v511 = vand.u32 2147483647, %v127
    %v512 = vand.u32 2147483647, %v128
    %v513 = vand.u32 2147483647, %v129
    %v514 = vand.u32 2147483647, %v130
    %v515 = vand.u32 2147483647, %v131
    %v516 = vand.u32 2147483647, %v132
    %v517 = vand.u32 2147483647, %v133
    %v518 = vand.u32 2147483647, %v134
    %v519 = vand.u32 2147483647, %v135
    %v520 = vand.u32 2147483647, %v136
    %v521 = vand.u32 2147483647, %v137
    %v522 = vand.u32 2147483647, %v138
    %v523 = vand.u32 2147483647, %v139
    %v524 = vand.u32 2147483647, %v140
    %v525 = vand.u32 2147483647, %v141
    %v526 = vand.u32 2147483647, %v142
    %v527 = vand.u32 2147483647, %v143
    %v528 = vand.u32 2147483647, %v144
    %v529 = vand.u32 2147483647, %v145
    %v530 = vand.u32 2147483647, %v146
    %v531 = vand.u32 2147483647, %v147
    %v532 = vand.u32 2147483647, %v148
    %v533 = vand.u32 2147483647, %v149
    %v534 = vand.u32 2147483647, %v150
    %v535 = vand.u32 2147483647, %v151
    %v536 = vand.u32 2147483647, %v152
    %v537 = vand.u32 2147483647, %v153
    %v538 = vand.u32 2147483647, %v154
    %v539 = vand.u32 2147483647, %v155
    %v540 = vand.u32 2147483647, %v156
    %v541 = vand.u32 2147483647, %v157
    %v542 = vand.u32 2147483647, %v158
    %v543 = vand.u32 2147483647, %v159
    %v544 = vand.u32 2147483647, %v160
    %v545 = vand.u32 2147483647, %v161
    %v546 = vand.u32 2147483647, %v162
    %v547 = vand.u32 2147483647, %v163
    %v548 = vand.u32 2147483647, %v164
    %v549 = vand.u32 2147483647, %v165
    %v550 = vand.u32 2147483647, %v166
    %v551 = vand.u32 2147483647, %v167
    %v552 = vsub.f32 0.0, %v488
    %v553 = vsub.f32 0.0, %v489
    %v554 = vsub.f32 0.0, %v490
    %v555 = vsub.f32 0.0, %v491
    %v556 = vsub.f32 0.0, %v492
    %v557 = vsub.f32 0.0, %v493
    %v558 = vsub.f32 0.0, %v494
    %v559 = vsub.f32 0.0, %v495
    %v560 = vsub.f32 0.0, %v496
    %v561 = vsub.f32 0.0, %v497
    %v562 = vsub.f32 0.0, %v498
    %v563 = vsub.f32 0.0, %v499
    %v564 = vsub.f32 0.0, %v500
    %v565 = vsub.f32 0.0, %v501
    %v566 = vsub.f32 0.0, %v502
    %v567 = vsub.f32 0.0, %v503
    %v568 = vsub.f32 0.0, %v504
    %v569 = vsub.f32 0.0, %v505
    %v570 = vsub.f32 0.0, %v506
    %v571 = vsub.f32 0.0, %v507
    %v572 = vsub.f32 0.0, %v508
    %v573 = vsub.f32 0.0, %v509
    %v574 = vsub.f32 0.0, %v510
    %v575 = vsub.f32 0.0, %v511
    %v576 = vsub.f32 0.0, %v512
    %v577 = vsub.f32 0.0, %v513
    %v578 = vsub.f32 0.0, %v514
    %v579 = vsub.f32 0.0, %v515
    %v580 = vsub.f32 0.0, %v516
    %v581 = vsub.f32 0.0, %v517
    %v582 = vsub.f32 0.0, %v518
    %v583 = vsub.f32 0.0, %v519
    %v584 = vsub.f32 0.0, %v520
    %v585 = vsub.f32 0.0, %v521
    %v586 = vsub.f32 0.0, %v522
    %v587 = vsub.f32 0.0, %v523
    %v588 = vsub.f32 0.0, %v524
    %v589 = vsub.f32 0.0, %v525
    %v590 = vsub.f32 0.0, %v526
    %v591 = vsub.f32 0.0, %v527
    %v592 = vsub.f32 0.0, %v528
    %v593 = vsub.f32 0.0, %v529
    %v594 = vsub.f32 0.0, %v530
    %v595 = vsub.f32 0.0, %v531
    %v596 = vsub.f32 0.0, %v532
    %v597 = vsub.f32 0.0, %v533
    %v598 = vsub.f32 0.0, %v534
    %v599 = vsub.f32 0.0, %v535
    %v600 = vsub.f32 0.0, %v536
    %v601 = vsub.f32 0.0, %v537
    %v602 = vsub.f32 0.0, %v538
    %v603 = vsub.f32 0.0, %v539
    %v604 = vsub.f32 0.0, %v540
    %v605 = vsub.f32 0.0, %v541
    %v606 = vsub.f32 0.0, %v542
    %v607 = vsub.f32 0.0, %v543
    %v608 = vsub.f32 0.0, %v544
    %v609 = vsub.f32 0.0, %v545
    %v610 = vsub.f32 0.0, %v546
    %v611 = vsub.f32 0.0, %v547
    %v612 = vsub.f32 0.0, %v548
    %v613 = vsub.f32 0.0, %v549
    %v614 = vsub.f32 0.0, %v550
    %v615 = vsub.f32 0.0, %v551
    %v616 = vmul.f32 %v552, 1.442695
    %v617 = vpow.pop %v616
    %v618 = vmul.f32 %v553, 1.442695
    %v619 = vpow.pop %v618
    %v620 = vmul.f32 %v554, 1.442695
    %v621 = vpow.pop %v620
    %v622 = vmul.f32 %v555, 1.442695
    %v623 = vpow.pop %v622
    %v624 = vmul.f32 %v556, 1.442695
    %v625 = vpow.pop %v624
    %v626 = vmul.f32 %v557, 1.442695
    %v627 = vpow.pop %v626
    %v628 = vmul.f32 %v558, 1.442695
    %v629 = vpow.pop %v628
    %v630 = vmul.f32 %v559, 1.442695
    %v631 = vpow.pop %v630
    %v632 = vmul.f32 %v560, 1.442695
    %v633 = vpow.pop %v632
    %v634 = vmul.f32 %v561, 1.442695
    %v635 = vpow.pop %v634
    %v636 = vmul.f32 %v562, 1.442695
    %v637 = vpow.pop %v636
    %v638 = vmul.f32 %v563, 1.442695
    %v639 = vpow.pop %v638
    %v640 = vmul.f32 %v564, 1.442695
    %v641 = vpow.pop %v640
    %v642 = vmul.f32 %v565, 1.442695
    %v643 = vpow.pop %v642
    %v644 = vmul.f32 %v566, 1.442695
    %v645 = vpow.pop %v644
    %v646 = vmul.f32 %v567, 1.442695
    %v647 = vpow.pop %v646
    %v648 = vmul.f32 %v568, 1.442695
    %v649 = vpow.pop %v648
    %v650 = vmul.f32 %v569, 1.442695
    %v651 = vpow.pop %v650
    %v652 = vmul.f32 %v570, 1.442695
    %v653 = vpow.pop %v652
    %v654 = vmul.f32 %v571, 1.442695
    %v655 = vpow.pop %v654
    %v656 = vmul.f32 %v572, 1.442695
    %v657 = vpow.pop %v656
    %v658 = vmul.f32 %v573, 1.442695
    %v659 = vpow.pop %v658
    %v660 = vmul.f32 %v574, 1.442695
    %v661 = vpow.pop %v660
    %v662 = vmul.f32 %v575, 1.442695
    %v663 = vpow.pop %v662
    %v664 = vmul.f32 %v576, 1.442695
    %v665 = vpow.pop %v664
    %v666 = vmul.f32 %v577, 1.442695
    %v667 = vpow.pop %v666
    %v668 = vmul.f32 %v578, 1.442695
    %v669 = vpow.pop %v668
    %v670 = vmul.f32 %v579, 1.442695
    %v671 = vpow.pop %v670
    %v672 = vmul.f32 %v580, 1.442695
    %v673 = vpow.pop %v672
    %v674 = vmul.f32 %v581, 1.442695
    %v675 = vpow.pop %v674
    %v676 = vmul.f32 %v582, 1.442695
    %v677 = vpow.pop %v676
    %v678 = vmul.f32 %v583, 1.442695
    %v679 = vpow.pop %v678
    %v680 = vmul.f32 %v584, 1.442695
    %v681 = vpow.pop %v680
    %v682 = vmul.f32 %v585, 1.442695
    %v683 = vpow.pop %v682
    %v684 = vmul.f32 %v586, 1.442695
    %v685 = vpow.pop %v684
    %v686 = vmul.f32 %v587, 1.442695
    %v687 = vpow.pop %v686
    %v688 = vmul.f32 %v588, 1.442695
    %v689 = vpow.pop %v688
    %v690 = vmul.f32 %v589, 1.442695
    %v691 = vpow.pop %v690
    %v692 = vmul.f32 %v590, 1.442695
    %v693 = vpow.pop %v692
    %v694 = vmul.f32 %v591, 1.442695
    %v695 = vpow.pop %v694
    %v696 = vmul.f32 %v592, 1.442695
    %v697 = vpow.pop %v696
    %v698 = vmul.f32 %v593, 1.442695
    %v699 = vpow.pop %v698
    %v700 = vmul.f32 %v594, 1.442695
    %v701 = vpow.pop %v700
    %v702 = vmul.f32 %v595, 1.442695
    %v703 = vpow.pop %v702
    %v704 = vmul.f32 %v596, 1.442695
    %v705 = vpow.pop %v704
    %v706 = vmul.f32 %v597, 1.442695
    %v707 = vpow.pop %v706
    %v708 = vmul.f32 %v598, 1.442695
    %v709 = vpow.pop %v708
    %v710 = vmul.f32 %v599, 1.442695
    %v711 = vpow.pop %v710
    %v712 = vmul.f32 %v600, 1.442695
    %v713 = vpow.pop %v712
    %v714 = vmul.f32 %v601, 1.442695
    %v715 = vpow.pop %v714
    %v716 = vmul.f32 %v602, 1.442695
    %v717 = vpow.pop %v716
    %v718 = vmul.f32 %v603, 1.442695
    %v719 = vpow.pop %v718
    %v720 = vmul.f32 %v604, 1.442695
    %v721 = vpow.pop %v720
    %v722 = vmul.f32 %v605, 1.442695
    %v723 = vpow.pop %v722
    %v724 = vmul.f32 %v606, 1.442695
    %v725 = vpow.pop %v724
    %v726 = vmul.f32 %v607, 1.442695
    %v727 = vpow.pop %v726
    %v728 = vmul.f32 %v608, 1.442695
    %v729 = vpow.pop %v728
    %v730 = vmul.f32 %v609, 1.442695
    %v731 = vpow.pop %v730
    %v732 = vmul.f32 %v610, 1.442695
    %v733 = vpow.pop %v732
    %v734 = vmul.f32 %v611, 1.442695
    %v735 = vpow.pop %v734
    %v736 = vmul.f32 %v612, 1.442695
    %v737 = vpow.pop %v736
    %v738 = vmul.f32 %v613, 1.442695
    %v739 = vpow.pop %v738
    %v740 = vmul.f32 %v614, 1.442695
    %v741 = vpow.pop %v740
    %v742 = vmul.f32 %v615, 1.442695
    %v743 = vpow.pop %v742
    %v744 = vadd.f32 %v617, 1.0
    %v745 = vlog2.pop %v744
    %v746 = vmul.f32 %v745, 0.6931472
    %v747 = vmul.f32 -0.5, %v617
    %v748 = vadd.f32 %v747, 1.0
    %v749 = vmul.f32 %v748, %v617
    %v750 = vand.u32 2147483647, %v617
    %vm751 = vcmp.lt.f32.partialorder %v750, 0.0004427343
    %v752 = vsel %vm751, %v749, %v746
    %v753 = vadd.f32 %v619, 1.0
    %v754 = vlog2.pop %v753
    %v755 = vmul.f32 %v754, 0.6931472
    %v756 = vmul.f32 -0.5, %v619
    %v757 = vadd.f32 %v756, 1.0
    %v758 = vmul.f32 %v757, %v619
    %v759 = vand.u32 2147483647, %v619
    %vm760 = vcmp.lt.f32.partialorder %v759, 0.0004427343
    %v761 = vsel %vm760, %v758, %v755
    %v762 = vadd.f32 %v621, 1.0
    %v763 = vlog2.pop %v762
    %v764 = vmul.f32 %v763, 0.6931472
    %v765 = vmul.f32 -0.5, %v621
    %v766 = vadd.f32 %v765, 1.0
    %v767 = vmul.f32 %v766, %v621
    %v768 = vand.u32 2147483647, %v621
    %vm769 = vcmp.lt.f32.partialorder %v768, 0.0004427343
    %v770 = vsel %vm769, %v767, %v764
    %v771 = vadd.f32 %v623, 1.0
    %v772 = vlog2.pop %v771
    %v773 = vmul.f32 %v772, 0.6931472
    %v774 = vmul.f32 -0.5, %v623
    %v775 = vadd.f32 %v774, 1.0
    %v776 = vmul.f32 %v775, %v623
    %v777 = vand.u32 2147483647, %v623
    %vm778 = vcmp.lt.f32.partialorder %v777, 0.0004427343
    %v779 = vsel %vm778, %v776, %v773
    %v780 = vadd.f32 %v625, 1.0
    %v781 = vlog2.pop %v780
    %v782 = vmul.f32 %v781, 0.6931472
    %v783 = vmul.f32 -0.5, %v625
    %v784 = vadd.f32 %v783, 1.0
    %v785 = vmul.f32 %v784, %v625
    %v786 = vand.u32 2147483647, %v625
    %vm787 = vcmp.lt.f32.partialorder %v786, 0.0004427343
    %v788 = vsel %vm787, %v785, %v782
    %v789 = vadd.f32 %v627, 1.0
    %v790 = vlog2.pop %v789
    %v791 = vmul.f32 %v790, 0.6931472
    %v792 = vmul.f32 -0.5, %v627
    %v793 = vadd.f32 %v792, 1.0
    %v794 = vmul.f32 %v793, %v627
    %v795 = vand.u32 2147483647, %v627
    %vm796 = vcmp.lt.f32.partialorder %v795, 0.0004427343
    %v797 = vsel %vm796, %v794, %v791
    %v798 = vadd.f32 %v629, 1.0
    %v799 = vlog2.pop %v798
    %v800 = vmul.f32 %v799, 0.6931472
    %v801 = vmul.f32 -0.5, %v629
    %v802 = vadd.f32 %v801, 1.0
    %v803 = vmul.f32 %v802, %v629
    %v804 = vand.u32 2147483647, %v629
    %vm805 = vcmp.lt.f32.partialorder %v804, 0.0004427343
    %v806 = vsel %vm805, %v803, %v800
    %v807 = vadd.f32 %v631, 1.0
    %v808 = vlog2.pop %v807
    %v809 = vmul.f32 %v808, 0.6931472
    %v810 = vmul.f32 -0.5, %v631
    %v811 = vadd.f32 %v810, 1.0
    %v812 = vmul.f32 %v811, %v631
    %v813 = vand.u32 2147483647, %v631
    %vm814 = vcmp.lt.f32.partialorder %v813, 0.0004427343
    %v815 = vsel %vm814, %v812, %v809
    %v816 = vadd.f32 %v633, 1.0
    %v817 = vlog2.pop %v816
    %v818 = vmul.f32 %v817, 0.6931472
    %v819 = vmul.f32 -0.5, %v633
    %v820 = vadd.f32 %v819, 1.0
    %v821 = vmul.f32 %v820, %v633
    %v822 = vand.u32 2147483647, %v633
    %vm823 = vcmp.lt.f32.partialorder %v822, 0.0004427343
    %v824 = vsel %vm823, %v821, %v818
    %v825 = vadd.f32 %v635, 1.0
    %v826 = vlog2.pop %v825
    %v827 = vmul.f32 %v826, 0.6931472
    %v828 = vmul.f32 -0.5, %v635
    %v829 = vadd.f32 %v828, 1.0
    %v830 = vmul.f32 %v829, %v635
    %v831 = vand.u32 2147483647, %v635
    %vm832 = vcmp.lt.f32.partialorder %v831, 0.0004427343
    %v833 = vsel %vm832, %v830, %v827
    %v834 = vadd.f32 %v637, 1.0
    %v835 = vlog2.pop %v834
    %v836 = vmul.f32 %v835, 0.6931472
    %v837 = vmul.f32 -0.5, %v637
    %v838 = vadd.f32 %v837, 1.0
    %v839 = vmul.f32 %v838, %v637
    %v840 = vand.u32 2147483647, %v637
    %vm841 = vcmp.lt.f32.partialorder %v840, 0.0004427343
    %v842 = vsel %vm841, %v839, %v836
    %v843 = vadd.f32 %v639, 1.0
    %v844 = vlog2.pop %v843
    %v845 = vmul.f32 %v844, 0.6931472
    %v846 = vmul.f32 -0.5, %v639
    %v847 = vadd.f32 %v846, 1.0
    %v848 = vmul.f32 %v847, %v639
    %v849 = vand.u32 2147483647, %v639
    %vm850 = vcmp.lt.f32.partialorder %v849, 0.0004427343
    %v851 = vsel %vm850, %v848, %v845
    %v852 = vadd.f32 %v641, 1.0
    %v853 = vlog2.pop %v852
    %v854 = vmul.f32 %v853, 0.6931472
    %v855 = vmul.f32 -0.5, %v641
    %v856 = vadd.f32 %v855, 1.0
    %v857 = vmul.f32 %v856, %v641
    %v858 = vand.u32 2147483647, %v641
    %vm859 = vcmp.lt.f32.partialorder %v858, 0.0004427343
    %v860 = vsel %vm859, %v857, %v854
    %v861 = vadd.f32 %v643, 1.0
    %v862 = vlog2.pop %v861
    %v863 = vmul.f32 %v862, 0.6931472
    %v864 = vmul.f32 -0.5, %v643
    %v865 = vadd.f32 %v864, 1.0
    %v866 = vmul.f32 %v865, %v643
    %v867 = vand.u32 2147483647, %v643
    %vm868 = vcmp.lt.f32.partialorder %v867, 0.0004427343
    %v869 = vsel %vm868, %v866, %v863
    %v870 = vadd.f32 %v645, 1.0
    %v871 = vlog2.pop %v870
    %v872 = vmul.f32 %v871, 0.6931472
    %v873 = vmul.f32 -0.5, %v645
    %v874 = vadd.f32 %v873, 1.0
    %v875 = vmul.f32 %v874, %v645
    %v876 = vand.u32 2147483647, %v645
    %vm877 = vcmp.lt.f32.partialorder %v876, 0.0004427343
    %v878 = vsel %vm877, %v875, %v872
    %v879 = vadd.f32 %v647, 1.0
    %v880 = vlog2.pop %v879
    %v881 = vmul.f32 %v880, 0.6931472
    %v882 = vmul.f32 -0.5, %v647
    %v883 = vadd.f32 %v882, 1.0
    %v884 = vmul.f32 %v883, %v647
    %v885 = vand.u32 2147483647, %v647
    %vm886 = vcmp.lt.f32.partialorder %v885, 0.0004427343
    %v887 = vsel %vm886, %v884, %v881
    %v888 = vadd.f32 %v649, 1.0
    %v889 = vlog2.pop %v888
    %v890 = vmul.f32 %v889, 0.6931472
    %v891 = vmul.f32 -0.5, %v649
    %v892 = vadd.f32 %v891, 1.0
    %v893 = vmul.f32 %v892, %v649
    %v894 = vand.u32 2147483647, %v649
    %vm895 = vcmp.lt.f32.partialorder %v894, 0.0004427343
    %v896 = vsel %vm895, %v893, %v890
    %v897 = vadd.f32 %v651, 1.0
    %v898 = vlog2.pop %v897
    %v899 = vmul.f32 %v898, 0.6931472
    %v900 = vmul.f32 -0.5, %v651
    %v901 = vadd.f32 %v900, 1.0
    %v902 = vmul.f32 %v901, %v651
    %v903 = vand.u32 2147483647, %v651
    %vm904 = vcmp.lt.f32.partialorder %v903, 0.0004427343
    %v905 = vsel %vm904, %v902, %v899
    %v906 = vadd.f32 %v653, 1.0
    %v907 = vlog2.pop %v906
    %v908 = vmul.f32 %v907, 0.6931472
    %v909 = vmul.f32 -0.5, %v653
    %v910 = vadd.f32 %v909, 1.0
    %v911 = vmul.f32 %v910, %v653
    %v912 = vand.u32 2147483647, %v653
    %vm913 = vcmp.lt.f32.partialorder %v912, 0.0004427343
    %v914 = vsel %vm913, %v911, %v908
    %v915 = vadd.f32 %v655, 1.0
    %v916 = vlog2.pop %v915
    %v917 = vmul.f32 %v916, 0.6931472
    %v918 = vmul.f32 -0.5, %v655
    %v919 = vadd.f32 %v918, 1.0
    %v920 = vmul.f32 %v919, %v655
    %v921 = vand.u32 2147483647, %v655
    %vm922 = vcmp.lt.f32.partialorder %v921, 0.0004427343
    %v923 = vsel %vm922, %v920, %v917
    %v924 = vadd.f32 %v657, 1.0
    %v925 = vlog2.pop %v924
    %v926 = vmul.f32 %v925, 0.6931472
    %v927 = vmul.f32 -0.5, %v657
    %v928 = vadd.f32 %v927, 1.0
    %v929 = vmul.f32 %v928, %v657
    %v930 = vand.u32 2147483647, %v657
    %vm931 = vcmp.lt.f32.partialorder %v930, 0.0004427343
    %v932 = vsel %vm931, %v929, %v926
    %v933 = vadd.f32 %v659, 1.0
    %v934 = vlog2.pop %v933
    %v935 = vmul.f32 %v934, 0.6931472
    %v936 = vmul.f32 -0.5, %v659
    %v937 = vadd.f32 %v936, 1.0
    %v938 = vmul.f32 %v937, %v659
    %v939 = vand.u32 2147483647, %v659
    %vm940 = vcmp.lt.f32.partialorder %v939, 0.0004427343
    %v941 = vsel %vm940, %v938, %v935
    %v942 = vadd.f32 %v661, 1.0
    %v943 = vlog2.pop %v942
    %v944 = vmul.f32 %v943, 0.6931472
    %v945 = vmul.f32 -0.5, %v661
    %v946 = vadd.f32 %v945, 1.0
    %v947 = vmul.f32 %v946, %v661
    %v948 = vand.u32 2147483647, %v661
    %vm949 = vcmp.lt.f32.partialorder %v948, 0.0004427343
    %v950 = vsel %vm949, %v947, %v944
    %v951 = vadd.f32 %v663, 1.0
    %v952 = vlog2.pop %v951
    %v953 = vmul.f32 %v952, 0.6931472
    %v954 = vmul.f32 -0.5, %v663
    %v955 = vadd.f32 %v954, 1.0
    %v956 = vmul.f32 %v955, %v663
    %v957 = vand.u32 2147483647, %v663
    %vm958 = vcmp.lt.f32.partialorder %v957, 0.0004427343
    %v959 = vsel %vm958, %v956, %v953
    %v960 = vadd.f32 %v665, 1.0
    %v961 = vlog2.pop %v960
    %v962 = vmul.f32 %v961, 0.6931472
    %v963 = vmul.f32 -0.5, %v665
    %v964 = vadd.f32 %v963, 1.0
    %v965 = vmul.f32 %v964, %v665
    %v966 = vand.u32 2147483647, %v665
    %vm967 = vcmp.lt.f32.partialorder %v966, 0.0004427343
    %v968 = vsel %vm967, %v965, %v962
    %v969 = vadd.f32 %v667, 1.0
    %v970 = vlog2.pop %v969
    %v971 = vmul.f32 %v970, 0.6931472
    %v972 = vmul.f32 -0.5, %v667
    %v973 = vadd.f32 %v972, 1.0
    %v974 = vmul.f32 %v973, %v667
    %v975 = vand.u32 2147483647, %v667
    %vm976 = vcmp.lt.f32.partialorder %v975, 0.0004427343
    %v977 = vsel %vm976, %v974, %v971
    %v978 = vadd.f32 %v669, 1.0
    %v979 = vlog2.pop %v978
    %v980 = vmul.f32 %v979, 0.6931472
    %v981 = vmul.f32 -0.5, %v669
    %v982 = vadd.f32 %v981, 1.0
    %v983 = vmul.f32 %v982, %v669
    %v984 = vand.u32 2147483647, %v669
    %vm985 = vcmp.lt.f32.partialorder %v984, 0.0004427343
    %v986 = vsel %vm985, %v983, %v980
    %v987 = vadd.f32 %v671, 1.0
    %v988 = vlog2.pop %v987
    %v989 = vmul.f32 %v988, 0.6931472
    %v990 = vmul.f32 -0.5, %v671
    %v991 = vadd.f32 %v990, 1.0
    %v992 = vmul.f32 %v991, %v671
    %v993 = vand.u32 2147483647, %v671
    %vm994 = vcmp.lt.f32.partialorder %v993, 0.0004427343
    %v995 = vsel %vm994, %v992, %v989
    %v996 = vadd.f32 %v673, 1.0
    %v997 = vlog2.pop %v996
    %v998 = vmul.f32 %v997, 0.6931472
    %v999 = vmul.f32 -0.5, %v673
    %v1000 = vadd.f32 %v999, 1.0
    %v1001 = vmul.f32 %v1000, %v673
    %v1002 = vand.u32 2147483647, %v673
    %vm1003 = vcmp.lt.f32.partialorder %v1002, 0.0004427343
    %v1004 = vsel %vm1003, %v1001, %v998
    %v1005 = vadd.f32 %v675, 1.0
    %v1006 = vlog2.pop %v1005
    %v1007 = vmul.f32 %v1006, 0.6931472
    %v1008 = vmul.f32 -0.5, %v675
    %v1009 = vadd.f32 %v1008, 1.0
    %v1010 = vmul.f32 %v1009, %v675
    %v1011 = vand.u32 2147483647, %v675
    %vm1012 = vcmp.lt.f32.partialorder %v1011, 0.0004427343
    %v1013 = vsel %vm1012, %v1010, %v1007
    %v1014 = vadd.f32 %v677, 1.0
    %v1015 = vlog2.pop %v1014
    %v1016 = vmul.f32 %v1015, 0.6931472
    %v1017 = vmul.f32 -0.5, %v677
    %v1018 = vadd.f32 %v1017, 1.0
    %v1019 = vmul.f32 %v1018, %v677
    %v1020 = vand.u32 2147483647, %v677
    %vm1021 = vcmp.lt.f32.partialorder %v1020, 0.0004427343
    %v1022 = vsel %vm1021, %v1019, %v1016
    %v1023 = vadd.f32 %v679, 1.0
    %v1024 = vlog2.pop %v1023
    %v1025 = vmul.f32 %v1024, 0.6931472
    %v1026 = vmul.f32 -0.5, %v679
    %v1027 = vadd.f32 %v1026, 1.0
    %v1028 = vmul.f32 %v1027, %v679
    %v1029 = vand.u32 2147483647, %v679
    %vm1030 = vcmp.lt.f32.partialorder %v1029, 0.0004427343
    %v1031 = vsel %vm1030, %v1028, %v1025
    %v1032 = vadd.f32 %v681, 1.0
    %v1033 = vlog2.pop %v1032
    %v1034 = vmul.f32 %v1033, 0.6931472
    %v1035 = vmul.f32 -0.5, %v681
    %v1036 = vadd.f32 %v1035, 1.0
    %v1037 = vmul.f32 %v1036, %v681
    %v1038 = vand.u32 2147483647, %v681
    %vm1039 = vcmp.lt.f32.partialorder %v1038, 0.0004427343
    %v1040 = vsel %vm1039, %v1037, %v1034
    %v1041 = vadd.f32 %v683, 1.0
    %v1042 = vlog2.pop %v1041
    %v1043 = vmul.f32 %v1042, 0.6931472
    %v1044 = vmul.f32 -0.5, %v683
    %v1045 = vadd.f32 %v1044, 1.0
    %v1046 = vmul.f32 %v1045, %v683
    %v1047 = vand.u32 2147483647, %v683
    %vm1048 = vcmp.lt.f32.partialorder %v1047, 0.0004427343
    %v1049 = vsel %vm1048, %v1046, %v1043
    %v1050 = vadd.f32 %v685, 1.0
    %v1051 = vlog2.pop %v1050
    %v1052 = vmul.f32 %v1051, 0.6931472
    %v1053 = vmul.f32 -0.5, %v685
    %v1054 = vadd.f32 %v1053, 1.0
    %v1055 = vmul.f32 %v1054, %v685
    %v1056 = vand.u32 2147483647, %v685
    %vm1057 = vcmp.lt.f32.partialorder %v1056, 0.0004427343
    %v1058 = vsel %vm1057, %v1055, %v1052
    %v1059 = vadd.f32 %v687, 1.0
    %v1060 = vlog2.pop %v1059
    %v1061 = vmul.f32 %v1060, 0.6931472
    %v1062 = vmul.f32 -0.5, %v687
    %v1063 = vadd.f32 %v1062, 1.0
    %v1064 = vmul.f32 %v1063, %v687
    %v1065 = vand.u32 2147483647, %v687
    %vm1066 = vcmp.lt.f32.partialorder %v1065, 0.0004427343
    %v1067 = vsel %vm1066, %v1064, %v1061
    %v1068 = vadd.f32 %v689, 1.0
    %v1069 = vlog2.pop %v1068
    %v1070 = vmul.f32 %v1069, 0.6931472
    %v1071 = vmul.f32 -0.5, %v689
    %v1072 = vadd.f32 %v1071, 1.0
    %v1073 = vmul.f32 %v1072, %v689
    %v1074 = vand.u32 2147483647, %v689
    %vm1075 = vcmp.lt.f32.partialorder %v1074, 0.0004427343
    %v1076 = vsel %vm1075, %v1073, %v1070
    %v1077 = vadd.f32 %v691, 1.0
    %v1078 = vlog2.pop %v1077
    %v1079 = vmul.f32 %v1078, 0.6931472
    %v1080 = vmul.f32 -0.5, %v691
    %v1081 = vadd.f32 %v1080, 1.0
    %v1082 = vmul.f32 %v1081, %v691
    %v1083 = vand.u32 2147483647, %v691
    %vm1084 = vcmp.lt.f32.partialorder %v1083, 0.0004427343
    %v1085 = vsel %vm1084, %v1082, %v1079
    %v1086 = vadd.f32 %v693, 1.0
    %v1087 = vlog2.pop %v1086
    %v1088 = vmul.f32 %v1087, 0.6931472
    %v1089 = vmul.f32 -0.5, %v693
    %v1090 = vadd.f32 %v1089, 1.0
    %v1091 = vmul.f32 %v1090, %v693
    %v1092 = vand.u32 2147483647, %v693
    %vm1093 = vcmp.lt.f32.partialorder %v1092, 0.0004427343
    %v1094 = vsel %vm1093, %v1091, %v1088
    %v1095 = vadd.f32 %v695, 1.0
    %v1096 = vlog2.pop %v1095
    %v1097 = vmul.f32 %v1096, 0.6931472
    %v1098 = vmul.f32 -0.5, %v695
    %v1099 = vadd.f32 %v1098, 1.0
    %v1100 = vmul.f32 %v1099, %v695
    %v1101 = vand.u32 2147483647, %v695
    %vm1102 = vcmp.lt.f32.partialorder %v1101, 0.0004427343
    %v1103 = vsel %vm1102, %v1100, %v1097
    %v1104 = vadd.f32 %v697, 1.0
    %v1105 = vlog2.pop %v1104
    %v1106 = vmul.f32 %v1105, 0.6931472
    %v1107 = vmul.f32 -0.5, %v697
    %v1108 = vadd.f32 %v1107, 1.0
    %v1109 = vmul.f32 %v1108, %v697
    %v1110 = vand.u32 2147483647, %v697
    %vm1111 = vcmp.lt.f32.partialorder %v1110, 0.0004427343
    %v1112 = vsel %vm1111, %v1109, %v1106
    %v1113 = vadd.f32 %v699, 1.0
    %v1114 = vlog2.pop %v1113
    %v1115 = vmul.f32 %v1114, 0.6931472
    %v1116 = vmul.f32 -0.5, %v699
    %v1117 = vadd.f32 %v1116, 1.0
    %v1118 = vmul.f32 %v1117, %v699
    %v1119 = vand.u32 2147483647, %v699
    %vm1120 = vcmp.lt.f32.partialorder %v1119, 0.0004427343
    %v1121 = vsel %vm1120, %v1118, %v1115
    %v1122 = vadd.f32 %v701, 1.0
    %v1123 = vlog2.pop %v1122
    %v1124 = vmul.f32 %v1123, 0.6931472
    %v1125 = vmul.f32 -0.5, %v701
    %v1126 = vadd.f32 %v1125, 1.0
    %v1127 = vmul.f32 %v1126, %v701
    %v1128 = vand.u32 2147483647, %v701
    %vm1129 = vcmp.lt.f32.partialorder %v1128, 0.0004427343
    %v1130 = vsel %vm1129, %v1127, %v1124
    %v1131 = vadd.f32 %v703, 1.0
    %v1132 = vlog2.pop %v1131
    %v1133 = vmul.f32 %v1132, 0.6931472
    %v1134 = vmul.f32 -0.5, %v703
    %v1135 = vadd.f32 %v1134, 1.0
    %v1136 = vmul.f32 %v1135, %v703
    %v1137 = vand.u32 2147483647, %v703
    %vm1138 = vcmp.lt.f32.partialorder %v1137, 0.0004427343
    %v1139 = vsel %vm1138, %v1136, %v1133
    %v1140 = vadd.f32 %v705, 1.0
    %v1141 = vlog2.pop %v1140
    %v1142 = vmul.f32 %v1141, 0.6931472
    %v1143 = vmul.f32 -0.5, %v705
    %v1144 = vadd.f32 %v1143, 1.0
    %v1145 = vmul.f32 %v1144, %v705
    %v1146 = vand.u32 2147483647, %v705
    %vm1147 = vcmp.lt.f32.partialorder %v1146, 0.0004427343
    %v1148 = vsel %vm1147, %v1145, %v1142
    %v1149 = vadd.f32 %v707, 1.0
    %v1150 = vlog2.pop %v1149
    %v1151 = vmul.f32 %v1150, 0.6931472
    %v1152 = vmul.f32 -0.5, %v707
    %v1153 = vadd.f32 %v1152, 1.0
    %v1154 = vmul.f32 %v1153, %v707
    %v1155 = vand.u32 2147483647, %v707
    %vm1156 = vcmp.lt.f32.partialorder %v1155, 0.0004427343
    %v1157 = vsel %vm1156, %v1154, %v1151
    %v1158 = vadd.f32 %v709, 1.0
    %v1159 = vlog2.pop %v1158
    %v1160 = vmul.f32 %v1159, 0.6931472
    %v1161 = vmul.f32 -0.5, %v709
    %v1162 = vadd.f32 %v1161, 1.0
    %v1163 = vmul.f32 %v1162, %v709
    %v1164 = vand.u32 2147483647, %v709
    %vm1165 = vcmp.lt.f32.partialorder %v1164, 0.0004427343
    %v1166 = vsel %vm1165, %v1163, %v1160
    %v1167 = vadd.f32 %v711, 1.0
    %v1168 = vlog2.pop %v1167
    %v1169 = vmul.f32 %v1168, 0.6931472
    %v1170 = vmul.f32 -0.5, %v711
    %v1171 = vadd.f32 %v1170, 1.0
    %v1172 = vmul.f32 %v1171, %v711
    %v1173 = vand.u32 2147483647, %v711
    %vm1174 = vcmp.lt.f32.partialorder %v1173, 0.0004427343
    %v1175 = vsel %vm1174, %v1172, %v1169
    %v1176 = vadd.f32 %v713, 1.0
    %v1177 = vlog2.pop %v1176
    %v1178 = vmul.f32 %v1177, 0.6931472
    %v1179 = vmul.f32 -0.5, %v713
    %v1180 = vadd.f32 %v1179, 1.0
    %v1181 = vmul.f32 %v1180, %v713
    %v1182 = vand.u32 2147483647, %v713
    %vm1183 = vcmp.lt.f32.partialorder %v1182, 0.0004427343
    %v1184 = vsel %vm1183, %v1181, %v1178
    %v1185 = vadd.f32 %v715, 1.0
    %v1186 = vlog2.pop %v1185
    %v1187 = vmul.f32 %v1186, 0.6931472
    %v1188 = vmul.f32 -0.5, %v715
    %v1189 = vadd.f32 %v1188, 1.0
    %v1190 = vmul.f32 %v1189, %v715
    %v1191 = vand.u32 2147483647, %v715
    %vm1192 = vcmp.lt.f32.partialorder %v1191, 0.0004427343
    %v1193 = vsel %vm1192, %v1190, %v1187
    %v1194 = vadd.f32 %v717, 1.0
    %v1195 = vlog2.pop %v1194
    %v1196 = vmul.f32 %v1195, 0.6931472
    %v1197 = vmul.f32 -0.5, %v717
    %v1198 = vadd.f32 %v1197, 1.0
    %v1199 = vmul.f32 %v1198, %v717
    %v1200 = vand.u32 2147483647, %v717
    %vm1201 = vcmp.lt.f32.partialorder %v1200, 0.0004427343
    %v1202 = vsel %vm1201, %v1199, %v1196
    %v1203 = vadd.f32 %v719, 1.0
    %v1204 = vlog2.pop %v1203
    %v1205 = vmul.f32 %v1204, 0.6931472
    %v1206 = vmul.f32 -0.5, %v719
    %v1207 = vadd.f32 %v1206, 1.0
    %v1208 = vmul.f32 %v1207, %v719
    %v1209 = vand.u32 2147483647, %v719
    %vm1210 = vcmp.lt.f32.partialorder %v1209, 0.0004427343
    %v1211 = vsel %vm1210, %v1208, %v1205
    %v1212 = vadd.f32 %v721, 1.0
    %v1213 = vlog2.pop %v1212
    %v1214 = vmul.f32 %v1213, 0.6931472
    %v1215 = vmul.f32 -0.5, %v721
    %v1216 = vadd.f32 %v1215, 1.0
    %v1217 = vmul.f32 %v1216, %v721
    %v1218 = vand.u32 2147483647, %v721
    %vm1219 = vcmp.lt.f32.partialorder %v1218, 0.0004427343
    %v1220 = vsel %vm1219, %v1217, %v1214
    %v1221 = vadd.f32 %v723, 1.0
    %v1222 = vlog2.pop %v1221
    %v1223 = vmul.f32 %v1222, 0.6931472
    %v1224 = vmul.f32 -0.5, %v723
    %v1225 = vadd.f32 %v1224, 1.0
    %v1226 = vmul.f32 %v1225, %v723
    %v1227 = vand.u32 2147483647, %v723
    %vm1228 = vcmp.lt.f32.partialorder %v1227, 0.0004427343
    %v1229 = vsel %vm1228, %v1226, %v1223
    %v1230 = vadd.f32 %v725, 1.0
    %v1231 = vlog2.pop %v1230
    %v1232 = vmul.f32 %v1231, 0.6931472
    %v1233 = vmul.f32 -0.5, %v725
    %v1234 = vadd.f32 %v1233, 1.0
    %v1235 = vmul.f32 %v1234, %v725
    %v1236 = vand.u32 2147483647, %v725
    %vm1237 = vcmp.lt.f32.partialorder %v1236, 0.0004427343
    %v1238 = vsel %vm1237, %v1235, %v1232
    %v1239 = vadd.f32 %v727, 1.0
    %v1240 = vlog2.pop %v1239
    %v1241 = vmul.f32 %v1240, 0.6931472
    %v1242 = vmul.f32 -0.5, %v727
    %v1243 = vadd.f32 %v1242, 1.0
    %v1244 = vmul.f32 %v1243, %v727
    %v1245 = vand.u32 2147483647, %v727
    %vm1246 = vcmp.lt.f32.partialorder %v1245, 0.0004427343
    %v1247 = vsel %vm1246, %v1244, %v1241
    %v1248 = vadd.f32 %v729, 1.0
    %v1249 = vlog2.pop %v1248
    %v1250 = vmul.f32 %v1249, 0.6931472
    %v1251 = vmul.f32 -0.5, %v729
    %v1252 = vadd.f32 %v1251, 1.0
    %v1253 = vmul.f32 %v1252, %v729
    %v1254 = vand.u32 2147483647, %v729
    %vm1255 = vcmp.lt.f32.partialorder %v1254, 0.0004427343
    %v1256 = vsel %vm1255, %v1253, %v1250
    %v1257 = vadd.f32 %v731, 1.0
    %v1258 = vlog2.pop %v1257
    %v1259 = vmul.f32 %v1258, 0.6931472
    %v1260 = vmul.f32 -0.5, %v731
    %v1261 = vadd.f32 %v1260, 1.0
    %v1262 = vmul.f32 %v1261, %v731
    %v1263 = vand.u32 2147483647, %v731
    %vm1264 = vcmp.lt.f32.partialorder %v1263, 0.0004427343
    %v1265 = vsel %vm1264, %v1262, %v1259
    %v1266 = vadd.f32 %v733, 1.0
    %v1267 = vlog2.pop %v1266
    %v1268 = vmul.f32 %v1267, 0.6931472
    %v1269 = vmul.f32 -0.5, %v733
    %v1270 = vadd.f32 %v1269, 1.0
    %v1271 = vmul.f32 %v1270, %v733
    %v1272 = vand.u32 2147483647, %v733
    %vm1273 = vcmp.lt.f32.partialorder %v1272, 0.0004427343
    %v1274 = vsel %vm1273, %v1271, %v1268
    %v1275 = vadd.f32 %v735, 1.0
    %v1276 = vlog2.pop %v1275
    %v1277 = vmul.f32 %v1276, 0.6931472
    %v1278 = vmul.f32 -0.5, %v735
    %v1279 = vadd.f32 %v1278, 1.0
    %v1280 = vmul.f32 %v1279, %v735
    %v1281 = vand.u32 2147483647, %v735
    %vm1282 = vcmp.lt.f32.partialorder %v1281, 0.0004427343
    %v1283 = vsel %vm1282, %v1280, %v1277
    %v1284 = vadd.f32 %v737, 1.0
    %v1285 = vlog2.pop %v1284
    %v1286 = vmul.f32 %v1285, 0.6931472
    %v1287 = vmul.f32 -0.5, %v737
    %v1288 = vadd.f32 %v1287, 1.0
    %v1289 = vmul.f32 %v1288, %v737
    %v1290 = vand.u32 2147483647, %v737
    %vm1291 = vcmp.lt.f32.partialorder %v1290, 0.0004427343
    %v1292 = vsel %vm1291, %v1289, %v1286
    %v1293 = vadd.f32 %v739, 1.0
    %v1294 = vlog2.pop %v1293
    %v1295 = vmul.f32 %v1294, 0.6931472
    %v1296 = vmul.f32 -0.5, %v739
    %v1297 = vadd.f32 %v1296, 1.0
    %v1298 = vmul.f32 %v1297, %v739
    %v1299 = vand.u32 2147483647, %v739
    %vm1300 = vcmp.lt.f32.partialorder %v1299, 0.0004427343
    %v1301 = vsel %vm1300, %v1298, %v1295
    %v1302 = vadd.f32 %v741, 1.0
    %v1303 = vlog2.pop %v1302
    %v1304 = vmul.f32 %v1303, 0.6931472
    %v1305 = vmul.f32 -0.5, %v741
    %v1306 = vadd.f32 %v1305, 1.0
    %v1307 = vmul.f32 %v1306, %v741
    %v1308 = vand.u32 2147483647, %v741
    %vm1309 = vcmp.lt.f32.partialorder %v1308, 0.0004427343
    %v1310 = vsel %vm1309, %v1307, %v1304
    %v1311 = vadd.f32 %v743, 1.0
    %v1312 = vlog2.pop %v1311
    %v1313 = vmul.f32 %v1312, 0.6931472
    %v1314 = vmul.f32 -0.5, %v743
    %v1315 = vadd.f32 %v1314, 1.0
    %v1316 = vmul.f32 %v1315, %v743
    %v1317 = vand.u32 2147483647, %v743
    %vm1318 = vcmp.lt.f32.partialorder %v1317, 0.0004427343
    %v1319 = vsel %vm1318, %v1316, %v1313
    %v1320 = vadd.f32 %v424, %v752
    %v1321 = vadd.f32 %v425, %v761
    %v1322 = vadd.f32 %v426, %v770
    %v1323 = vadd.f32 %v427, %v779
    %v1324 = vadd.f32 %v428, %v788
    %v1325 = vadd.f32 %v429, %v797
    %v1326 = vadd.f32 %v430, %v806
    %v1327 = vadd.f32 %v431, %v815
    %v1328 = vadd.f32 %v432, %v824
    %v1329 = vadd.f32 %v433, %v833
    %v1330 = vadd.f32 %v434, %v842
    %v1331 = vadd.f32 %v435, %v851
    %v1332 = vadd.f32 %v436, %v860
    %v1333 = vadd.f32 %v437, %v869
    %v1334 = vadd.f32 %v438, %v878
    %v1335 = vadd.f32 %v439, %v887
    %v1336 = vadd.f32 %v440, %v896
    %v1337 = vadd.f32 %v441, %v905
    %v1338 = vadd.f32 %v442, %v914
    %v1339 = vadd.f32 %v443, %v923
    %v1340 = vadd.f32 %v444, %v932
    %v1341 = vadd.f32 %v445, %v941
    %v1342 = vadd.f32 %v446, %v950
    %v1343 = vadd.f32 %v447, %v959
    %v1344 = vadd.f32 %v448, %v968
    %v1345 = vadd.f32 %v449, %v977
    %v1346 = vadd.f32 %v450, %v986
    %v1347 = vadd.f32 %v451, %v995
    %v1348 = vadd.f32 %v452, %v1004
    %v1349 = vadd.f32 %v453, %v1013
    %v1350 = vadd.f32 %v454, %v1022
    %v1351 = vadd.f32 %v455, %v1031
    %v1352 = vadd.f32 %v456, %v1040
    %v1353 = vadd.f32 %v457, %v1049
    %v1354 = vadd.f32 %v458, %v1058
    %v1355 = vadd.f32 %v459, %v1067
    %v1356 = vadd.f32 %v460, %v1076
    %v1357 = vadd.f32 %v461, %v1085
    %v1358 = vadd.f32 %v462, %v1094
    %v1359 = vadd.f32 %v463, %v1103
    %v1360 = vadd.f32 %v464, %v1112
    %v1361 = vadd.f32 %v465, %v1121
    %v1362 = vadd.f32 %v466, %v1130
    %v1363 = vadd.f32 %v467, %v1139
    %v1364 = vadd.f32 %v468, %v1148
    %v1365 = vadd.f32 %v469, %v1157
    %v1366 = vadd.f32 %v470, %v1166
    %v1367 = vadd.f32 %v471, %v1175
    %v1368 = vadd.f32 %v472, %v1184
    %v1369 = vadd.f32 %v473, %v1193
    %v1370 = vadd.f32 %v474, %v1202
    %v1371 = vadd.f32 %v475, %v1211
    %v1372 = vadd.f32 %v476, %v1220
    %v1373 = vadd.f32 %v477, %v1229
    %v1374 = vadd.f32 %v478, %v1238
    %v1375 = vadd.f32 %v479, %v1247
    %v1376 = vadd.f32 %v480, %v1256
    %v1377 = vadd.f32 %v481, %v1265
    %v1378 = vadd.f32 %v482, %v1274
    %v1379 = vadd.f32 %v483, %v1283
    %v1380 = vadd.f32 %v484, %v1292
    %v1381 = vadd.f32 %v485, %v1301
    %v1382 = vadd.f32 %v486, %v1310
    %v1383 = vadd.f32 %v487, %v1319
    %v1384 = vsub.f32 1.0, %v168
    %v1385 = vsub.f32 1.0, %v169
    %v1386 = vsub.f32 1.0, %v170
    %v1387 = vsub.f32 1.0, %v171
    %v1388 = vsub.f32 1.0, %v172
    %v1389 = vsub.f32 1.0, %v173
    %v1390 = vsub.f32 1.0, %v174
    %v1391 = vsub.f32 1.0, %v175
    %v1392 = vsub.f32 1.0, %v176
    %v1393 = vsub.f32 1.0, %v177
    %v1394 = vsub.f32 1.0, %v178
    %v1395 = vsub.f32 1.0, %v179
    %v1396 = vsub.f32 1.0, %v180
    %v1397 = vsub.f32 1.0, %v181
    %v1398 = vsub.f32 1.0, %v182
    %v1399 = vsub.f32 1.0, %v183
    %v1400 = vsub.f32 1.0, %v184
    %v1401 = vsub.f32 1.0, %v185
    %v1402 = vsub.f32 1.0, %v186
    %v1403 = vsub.f32 1.0, %v187
    %v1404 = vsub.f32 1.0, %v188
    %v1405 = vsub.f32 1.0, %v189
    %v1406 = vsub.f32 1.0, %v190
    %v1407 = vsub.f32 1.0, %v191
    %v1408 = vsub.f32 1.0, %v192
    %v1409 = vsub.f32 1.0, %v193
    %v1410 = vsub.f32 1.0, %v194
    %v1411 = vsub.f32 1.0, %v195
    %v1412 = vsub.f32 1.0, %v196
    %v1413 = vsub.f32 1.0, %v197
    %v1414 = vsub.f32 1.0, %v198
    %v1415 = vsub.f32 1.0, %v199
    %v1416 = vsub.f32 1.0, %v200
    %v1417 = vsub.f32 1.0, %v201
    %v1418 = vsub.f32 1.0, %v202
    %v1419 = vsub.f32 1.0, %v203
    %v1420 = vsub.f32 1.0, %v204
    %v1421 = vsub.f32 1.0, %v205
    %v1422 = vsub.f32 1.0, %v206
    %v1423 = vsub.f32 1.0, %v207
    %v1424 = vsub.f32 1.0, %v208
    %v1425 = vsub.f32 1.0, %v209
    %v1426 = vsub.f32 1.0, %v210
    %v1427 = vsub.f32 1.0, %v211
    %v1428 = vsub.f32 1.0, %v212
    %v1429 = vsub.f32 1.0, %v213
    %v1430 = vsub.f32 1.0, %v214
    %v1431 = vsub.f32 1.0, %v215
    %v1432 = vsub.f32 1.0, %v216
    %v1433 = vsub.f32 1.0, %v217
    %v1434 = vsub.f32 1.0, %v218
    %v1435 = vsub.f32 1.0, %v219
    %v1436 = vsub.f32 1.0, %v220
    %v1437 = vsub.f32 1.0, %v221
    %v1438 = vsub.f32 1.0, %v222
    %v1439 = vsub.f32 1.0, %v223
    %v1440 = vsub.f32 1.0, %v224
    %v1441 = vsub.f32 1.0, %v225
    %v1442 = vsub.f32 1.0, %v226
    %v1443 = vsub.f32 1.0, %v227
    %v1444 = vsub.f32 1.0, %v228
    %v1445 = vsub.f32 1.0, %v229
    %v1446 = vsub.f32 1.0, %v230
    %v1447 = vsub.f32 1.0, %v231
    %v1448 = vmul.f32 %v1384, %v104
    %v1449 = vmul.f32 %v1385, %v105
    %v1450 = vmul.f32 %v1386, %v106
    %v1451 = vmul.f32 %v1387, %v107
    %v1452 = vmul.f32 %v1388, %v108
    %v1453 = vmul.f32 %v1389, %v109
    %v1454 = vmul.f32 %v1390, %v110
    %v1455 = vmul.f32 %v1391, %v111
    %v1456 = vmul.f32 %v1392, %v112
    %v1457 = vmul.f32 %v1393, %v113
    %v1458 = vmul.f32 %v1394, %v114
    %v1459 = vmul.f32 %v1395, %v115
    %v1460 = vmul.f32 %v1396, %v116
    %v1461 = vmul.f32 %v1397, %v117
    %v1462 = vmul.f32 %v1398, %v118
    %v1463 = vmul.f32 %v1399, %v119
    %v1464 = vmul.f32 %v1400, %v120
    %v1465 = vmul.f32 %v1401, %v121
    %v1466 = vmul.f32 %v1402, %v122
    %v1467 = vmul.f32 %v1403, %v123
    %v1468 = vmul.f32 %v1404, %v124
    %v1469 = vmul.f32 %v1405, %v125
    %v1470 = vmul.f32 %v1406, %v126
    %v1471 = vmul.f32 %v1407, %v127
    %v1472 = vmul.f32 %v1408, %v128
    %v1473 = vmul.f32 %v1409, %v129
    %v1474 = vmul.f32 %v1410, %v130
    %v1475 = vmul.f32 %v1411, %v131
    %v1476 = vmul.f32 %v1412, %v132
    %v1477 = vmul.f32 %v1413, %v133
    %v1478 = vmul.f32 %v1414, %v134
    %v1479 = vmul.f32 %v1415, %v135
    %v1480 = vmul.f32 %v1416, %v136
    %v1481 = vmul.f32 %v1417, %v137
    %v1482 = vmul.f32 %v1418, %v138
    %v1483 = vmul.f32 %v1419, %v139
    %v1484 = vmul.f32 %v1420, %v140
    %v1485 = vmul.f32 %v1421, %v141
    %v1486 = vmul.f32 %v1422, %v142
    %v1487 = vmul.f32 %v1423, %v143
    %v1488 = vmul.f32 %v1424, %v144
    %v1489 = vmul.f32 %v1425, %v145
    %v1490 = vmul.f32 %v1426, %v146
    %v1491 = vmul.f32 %v1427, %v147
    %v1492 = vmul.f32 %v1428, %v148
    %v1493 = vmul.f32 %v1429, %v149
    %v1494 = vmul.f32 %v1430, %v150
    %v1495 = vmul.f32 %v1431, %v151
    %v1496 = vmul.f32 %v1432, %v152
    %v1497 = vmul.f32 %v1433, %v153
    %v1498 = vmul.f32 %v1434, %v154
    %v1499 = vmul.f32 %v1435, %v155
    %v1500 = vmul.f32 %v1436, %v156
    %v1501 = vmul.f32 %v1437, %v157
    %v1502 = vmul.f32 %v1438, %v158
    %v1503 = vmul.f32 %v1439, %v159
    %v1504 = vmul.f32 %v1440, %v160
    %v1505 = vmul.f32 %v1441, %v161
    %v1506 = vmul.f32 %v1442, %v162
    %v1507 = vmul.f32 %v1443, %v163
    %v1508 = vmul.f32 %v1444, %v164
    %v1509 = vmul.f32 %v1445, %v165
    %v1510 = vmul.f32 %v1446, %v166
    %v1511 = vmul.f32 %v1447, %v167
    %v1512 = vmul.f32 %v296, %v1320
    %v1513 = vmul.f32 %v297, %v1321
    %v1514 = vmul.f32 %v298, %v1322
    %v1515 = vmul.f32 %v299, %v1323
    %v1516 = vmul.f32 %v300, %v1324
    %v1517 = vmul.f32 %v301, %v1325
    %v1518 = vmul.f32 %v302, %v1326
    %v1519 = vmul.f32 %v303, %v1327
    %v1520 = vmul.f32 %v304, %v1328
    %v1521 = vmul.f32 %v305, %v1329
    %v1522 = vmul.f32 %v306, %v1330
    %v1523 = vmul.f32 %v307, %v1331
    %v1524 = vmul.f32 %v308, %v1332
    %v1525 = vmul.f32 %v309, %v1333
    %v1526 = vmul.f32 %v310, %v1334
    %v1527 = vmul.f32 %v311, %v1335
    %v1528 = vmul.f32 %v312, %v1336
    %v1529 = vmul.f32 %v313, %v1337
    %v1530 = vmul.f32 %v314, %v1338
    %v1531 = vmul.f32 %v315, %v1339
    %v1532 = vmul.f32 %v316, %v1340
    %v1533 = vmul.f32 %v317, %v1341
    %v1534 = vmul.f32 %v318, %v1342
    %v1535 = vmul.f32 %v319, %v1343
    %v1536 = vmul.f32 %v320, %v1344
    %v1537 = vmul.f32 %v321, %v1345
    %v1538 = vmul.f32 %v322, %v1346
    %v1539 = vmul.f32 %v323, %v1347
    %v1540 = vmul.f32 %v324, %v1348
    %v1541 = vmul.f32 %v325, %v1349
    %v1542 = vmul.f32 %v326, %v1350
    %v1543 = vmul.f32 %v327, %v1351
    %v1544 = vmul.f32 %v328, %v1352
    %v1545 = vmul.f32 %v329, %v1353
    %v1546 = vmul.f32 %v330, %v1354
    %v1547 = vmul.f32 %v331, %v1355
    %v1548 = vmul.f32 %v332, %v1356
    %v1549 = vmul.f32 %v333, %v1357
    %v1550 = vmul.f32 %v334, %v1358
    %v1551 = vmul.f32 %v335, %v1359
    %v1552 = vmul.f32 %v336, %v1360
    %v1553 = vmul.f32 %v337, %v1361
    %v1554 = vmul.f32 %v338, %v1362
    %v1555 = vmul.f32 %v339, %v1363
    %v1556 = vmul.f32 %v340, %v1364
    %v1557 = vmul.f32 %v341, %v1365
    %v1558 = vmul.f32 %v342, %v1366
    %v1559 = vmul.f32 %v343, %v1367
    %v1560 = vmul.f32 %v344, %v1368
    %v1561 = vmul.f32 %v345, %v1369
    %v1562 = vmul.f32 %v346, %v1370
    %v1563 = vmul.f32 %v347, %v1371
    %v1564 = vmul.f32 %v348, %v1372
    %v1565 = vmul.f32 %v349, %v1373
    %v1566 = vmul.f32 %v350, %v1374
    %v1567 = vmul.f32 %v351, %v1375
    %v1568 = vmul.f32 %v352, %v1376
    %v1569 = vmul.f32 %v353, %v1377
    %v1570 = vmul.f32 %v354, %v1378
    %v1571 = vmul.f32 %v355, %v1379
    %v1572 = vmul.f32 %v356, %v1380
    %v1573 = vmul.f32 %v357, %v1381
    %v1574 = vmul.f32 %v358, %v1382
    %v1575 = vmul.f32 %v359, %v1383
    %v1576 = vadd.f32 %v1448, %v1512
    %v1577 = vadd.f32 %v1449, %v1513
    %v1578 = vadd.f32 %v1450, %v1514
    %v1579 = vadd.f32 %v1451, %v1515
    %v1580 = vadd.f32 %v1452, %v1516
    %v1581 = vadd.f32 %v1453, %v1517
    %v1582 = vadd.f32 %v1454, %v1518
    %v1583 = vadd.f32 %v1455, %v1519
    %v1584 = vadd.f32 %v1456, %v1520
    %v1585 = vadd.f32 %v1457, %v1521
    %v1586 = vadd.f32 %v1458, %v1522
    %v1587 = vadd.f32 %v1459, %v1523
    %v1588 = vadd.f32 %v1460, %v1524
    %v1589 = vadd.f32 %v1461, %v1525
    %v1590 = vadd.f32 %v1462, %v1526
    %v1591 = vadd.f32 %v1463, %v1527
    %v1592 = vadd.f32 %v1464, %v1528
    %v1593 = vadd.f32 %v1465, %v1529
    %v1594 = vadd.f32 %v1466, %v1530
    %v1595 = vadd.f32 %v1467, %v1531
    %v1596 = vadd.f32 %v1468, %v1532
    %v1597 = vadd.f32 %v1469, %v1533
    %v1598 = vadd.f32 %v1470, %v1534
    %v1599 = vadd.f32 %v1471, %v1535
    %v1600 = vadd.f32 %v1472, %v1536
    %v1601 = vadd.f32 %v1473, %v1537
    %v1602 = vadd.f32 %v1474, %v1538
    %v1603 = vadd.f32 %v1475, %v1539
    %v1604 = vadd.f32 %v1476, %v1540
    %v1605 = vadd.f32 %v1477, %v1541
    %v1606 = vadd.f32 %v1478, %v1542
    %v1607 = vadd.f32 %v1479, %v1543
    %v1608 = vadd.f32 %v1480, %v1544
    %v1609 = vadd.f32 %v1481, %v1545
    %v1610 = vadd.f32 %v1482, %v1546
    %v1611 = vadd.f32 %v1483, %v1547
    %v1612 = vadd.f32 %v1484, %v1548
    %v1613 = vadd.f32 %v1485, %v1549
    %v1614 = vadd.f32 %v1486, %v1550
    %v1615 = vadd.f32 %v1487, %v1551
    %v1616 = vadd.f32 %v1488, %v1552
    %v1617 = vadd.f32 %v1489, %v1553
    %v1618 = vadd.f32 %v1490, %v1554
    %v1619 = vadd.f32 %v1491, %v1555
    %v1620 = vadd.f32 %v1492, %v1556
    %v1621 = vadd.f32 %v1493, %v1557
    %v1622 = vadd.f32 %v1494, %v1558
    %v1623 = vadd.f32 %v1495, %v1559
    %v1624 = vadd.f32 %v1496, %v1560
    %v1625 = vadd.f32 %v1497, %v1561
    %v1626 = vadd.f32 %v1498, %v1562
    %v1627 = vadd.f32 %v1499, %v1563
    %v1628 = vadd.f32 %v1500, %v1564
    %v1629 = vadd.f32 %v1501, %v1565
    %v1630 = vadd.f32 %v1502, %v1566
    %v1631 = vadd.f32 %v1503, %v1567
    %v1632 = vadd.f32 %v1504, %v1568
    %v1633 = vadd.f32 %v1505, %v1569
    %v1634 = vadd.f32 %v1506, %v1570
    %v1635 = vadd.f32 %v1507, %v1571
    %v1636 = vadd.f32 %v1508, %v1572
    %v1637 = vadd.f32 %v1509, %v1573
    %v1638 = vadd.f32 %v1510, %v1574
    %v1639 = vadd.f32 %v1511, %v1575
    %v1640 = vadd.f32 %v1576, %v1577
    %v1641 = vadd.f32 %v1640, %v1578
    %v1642 = vadd.f32 %v1641, %v1579
    %v1643 = vadd.f32 %v1642, %v1580
    %v1644 = vadd.f32 %v1643, %v1581
    %v1645 = vadd.f32 %v1644, %v1582
    %v1646 = vadd.f32 %v1645, %v1583
    %v1647 = vadd.f32 %v1646, %v1584
    %v1648 = vadd.f32 %v1647, %v1585
    %v1649 = vadd.f32 %v1648, %v1586
    %v1650 = vadd.f32 %v1649, %v1587
    %v1651 = vadd.f32 %v1650, %v1588
    %v1652 = vadd.f32 %v1651, %v1589
    %v1653 = vadd.f32 %v1652, %v1590
    %v1654 = vadd.f32 %v1653, %v1591
    %v1655 = vadd.f32 %v1654, %v1592
    %v1656 = vadd.f32 %v1655, %v1593
    %v1657 = vadd.f32 %v1656, %v1594
    %v1658 = vadd.f32 %v1657, %v1595
    %v1659 = vadd.f32 %v1658, %v1596
    %v1660 = vadd.f32 %v1659, %v1597
    %v1661 = vadd.f32 %v1660, %v1598
    %v1662 = vadd.f32 %v1661, %v1599
    %v1663 = vadd.f32 %v1662, %v1600
    %v1664 = vadd.f32 %v1663, %v1601
    %v1665 = vadd.f32 %v1664, %v1602
    %v1666 = vadd.f32 %v1665, %v1603
    %v1667 = vadd.f32 %v1666, %v1604
    %v1668 = vadd.f32 %v1667, %v1605
    %v1669 = vadd.f32 %v1668, %v1606
    %v1670 = vadd.f32 %v1669, %v1607
    %v1671 = vadd.f32 %v1670, %v1608
    %v1672 = vadd.f32 %v1671, %v1609
    %v1673 = vadd.f32 %v1672, %v1610
    %v1674 = vadd.f32 %v1673, %v1611
    %v1675 = vadd.f32 %v1674, %v1612
    %v1676 = vadd.f32 %v1675, %v1613
    %v1677 = vadd.f32 %v1676, %v1614
    %v1678 = vadd.f32 %v1677, %v1615
    %v1679 = vadd.f32 %v1678, %v1616
    %v1680 = vadd.f32 %v1679, %v1617
    %v1681 = vadd.f32 %v1680, %v1618
    %v1682 = vadd.f32 %v1681, %v1619
    %v1683 = vadd.f32 %v1682, %v1620
    %v1684 = vadd.f32 %v1683, %v1621
    %v1685 = vadd.f32 %v1684, %v1622
    %v1686 = vadd.f32 %v1685, %v1623
    %v1687 = vadd.f32 %v1686, %v1624
    %v1688 = vadd.f32 %v1687, %v1625
    %v1689 = vadd.f32 %v1688, %v1626
    %v1690 = vadd.f32 %v1689, %v1627
    %v1691 = vadd.f32 %v1690, %v1628
    %v1692 = vadd.f32 %v1691, %v1629
    %v1693 = vadd.f32 %v1692, %v1630
    %v1694 = vadd.f32 %v1693, %v1631
    %v1695 = vadd.f32 %v1694, %v1632
    %v1696 = vadd.f32 %v1695, %v1633
    %v1697 = vadd.f32 %v1696, %v1634
    %v1698 = vadd.f32 %v1697, %v1635
    %v1699 = vadd.f32 %v1698, %v1636
    %v1700 = vadd.f32 %v1699, %v1637
    %v1701 = vadd.f32 %v1700, %v1638
    %v1702 = vadd.f32 %v1701, %v1639
    %1703 = vadd.xlane.f32.xlu0 %v1702
    %v1704 = vpop.xlane.xlu0 %1703
    %v1705 = vrot.slane %v1704, 4
    %v1706 = vadd.f32 %v1704, %v1705
    %v1707 = vrot.slane %v1706, 2
    %v1708 = vadd.f32 %v1706, %v1707
    %v1709 = vrot.slane %v1708, 1
    %v1710 = vadd.f32 %v1708, %v1709
    %s1711 = vtos %v1710
    %v1712 = vstv %s1711
    %1713 = vst [vmem:[#allocation7] sm:$0xff] %v1712
    // Predicated region
    $region18: #{tpu_custom_call.1} parent=1 // pred_check
      _
    $region19: #{tpu_custom_call.1} parent=1 // pred_check_branch
      %1715 = sbr.rel (0) target = $region21
    $region20: #{tpu_custom_call.1} parent=1 // pred_region
      %s1717 = ssub.s32 128, 128
      %1718 = vsyncadd [#allocation4], %s1717
      %s1720 = sshll.u32 [#allocation7], 4
      %s1721 = int_to_ptr.vmem [resolvable:$true] %s1720
      %1723 = dma.vmem_to_hbm [thread:$0]  %s1721, 128, %s2, [#allocation4]
    $region21: #{tpu_custom_call.1} parent=1 // pred_fallthru
      _
    // Predicated region
    $region22: #{tpu_custom_call.1} parent=1 // pred_check
      _
    $region23: #{tpu_custom_call.1} parent=1 // pred_check_branch
      %1725 = sbr.rel (0) target = $region25
    $region24: #{tpu_custom_call.1} parent=1 // pred_region
      %1726 = dma.done [#allocation4], 128
    $region25: #{tpu_custom_call.1} parent=1 // pred_fallthru
      _
    %1727 = vsyncpa [#allocation3], 1
    %1728 = vsyncpa [#allocation6], 1
    %1729 = vsyncpa [#allocation4], 1

</llo_original>
